<compile_context>
chip_gen: v7x
topology: tpu7x:2x2x1
jax: 0.10.0
libtpu: 0.0.40
codegen_flags: <defaults>
</compile_context>

<pallas_src>
import functools

import jax
import jax.numpy as jnp
from jax.experimental import pallas as pl
from jax.experimental.pallas import tpu as pltpu


# --------------------------------------------------------------------------------------
# helpers
# --------------------------------------------------------------------------------------

def _layernorm(x, gamma, beta, eps=1e-5):
    mu = jnp.mean(x, axis=-1, keepdims=True)
    var = jnp.mean((x - mu) ** 2, axis=-1, keepdims=True)
    return (x - mu) * jax.lax.rsqrt(var + eps) * gamma + beta


_HAS_BUFFERED = hasattr(pl, "Buffered")


def _weight_spec(shape):
    """Replicated (grid-constant) VMEM input; single-buffered when supported."""
    index_map = lambda b, qi: (0,) * len(shape)
    if _HAS_BUFFERED:
        try:
            # Constant index map -> no pipelining needed; single buffer halves VMEM.
            return pl.BlockSpec(shape, index_map, pipeline_mode=pl.Buffered(1))
        except Exception:  # older jax without pipeline_mode kwarg
            pass
    return pl.BlockSpec(shape, index_map)


def _default_vmem_limit_bytes():
    # ~100 MiB on v5e/v6e (128 MiB physical), ~51 MiB on v7x (64 MiB physical);
    # conservative 64 MiB if the hardware query is unavailable.
    try:
        cap = int(pltpu.get_tpu_info().vmem_capacity_bytes)
        if cap > 0:
            return max(32 * 1024 * 1024, min(int(cap * 0.8), 100 * 1024 * 1024))
    except Exception:
        pass
    return 64 * 1024 * 1024


def _default_max_q_tile():
    # v6e/v7x MXUs are 256-wide -> prefer TQ=256; v5e (4x128^2 MXU) keeps 128.
    try:
        name = str(getattr(pltpu.get_tpu_info(), "chip_version", "")).lower()
        if "v5" in name:
            return 128
        if ("v6" in name) or ("v7" in name):
            return 256
    except Exception:
        pass
    return 128


def _pick_q_tile(L, q_tile=None, max_tile=128):
    if q_tile is not None:
        assert L % q_tile == 0 and (q_tile % 8 == 0 or q_tile == L)
        return q_tile
    if L <= max_tile:
        return L
    t = (max_tile // 8) * 8
    while t >= 8:
        if L % t == 0:
            return t
        t -= 8
    return L


def _cost_estimate(B, L, D, d_ff, emit_attn):
    matmul_flops = 2 * B * (
        3 * L * D * D        # fused QKV projection
        + 2 * L * L * D      # scores + attn @ V
        + L * D * D          # output projection
        + 2 * L * D * d_ff   # FFN
    )
    bytes_accessed = (
        B * L * D * 4 * 2                               # x in + x out (f32)
        + (3 * D * D + D * D + 2 * D * d_ff) * 2        # bf16 weights
        + (B * L * L * 2 if emit_attn else 0)           # bf16 attention maps
    )
    return pl.CostEstimate(flops=matmul_flops,
                           transcendentals=B * L * L,   # softmax exp
                           bytes_accessed=bytes_accessed)


# --------------------------------------------------------------------------------------
# kernels
# --------------------------------------------------------------------------------------

def encoder_layer_kernel(x_hbm,
                         wqkv_ref, bqkv_ref, wo_ref, bo_ref,
                         w1_ref, b1_ref, w2_ref, b2_ref,
                         g1_ref, be1_ref, g2_ref, be2_ref,
                         gf_ref, bef_ref,
                         *refs, apply_final_norm: bool, emit_attn: bool):
    """One encoder layer: self-attention + FFN + LayerNorms, tiled by query rows."""
    if emit_attn:
        xo_ref, attn_ref, x_stage, k_scr, v_scr, dma_sem = refs
    else:
        xo_ref, x_stage, k_scr, v_scr, dma_sem = refs
        attn_ref = None

    TQ = xo_ref.shape[1]
    D = xo_ref.shape[2]
    scale = 1.0 / float(D) ** 0.5
    b = pl.program_id(0)
    qi = pl.program_id(1)

    # Once per batch element: stage x[b] (single-buffered) and project K/V straight
    # into bf16 VMEM scratch (no (L, 2D) intermediate).  Reused by all query tiles.
    @pl.when(qi == 0)
    def _():
        cp = pltpu.make_async_copy(x_hbm.at[b], x_stage, dma_sem)
        cp.start()
        cp.wait()
        x_all = x_stage[...].astype(jnp.bfloat16)                        # (L, D)
        k_scr[...] = (jnp.dot(x_all, wqkv_ref[:, D:2 * D],
                              preferred_element_type=jnp.float32)
                      + bqkv_ref[:, D:2 * D]).astype(jnp.bfloat16)
        v_scr[...] = (jnp.dot(x_all, wqkv_ref[:, 2 * D:],
                              preferred_element_type=jnp.float32)
                      + bqkv_ref[:, 2 * D:]).astype(jnp.bfloat16)

    # Query tile comes straight from the staged copy (x read from HBM exactly once).
    q_start = pl.multiple_of(qi * TQ, TQ)
    x_q = x_stage[pl.ds(q_start, TQ), :]                                 # (TQ, D) f32
    xq_b = x_q.astype(jnp.bfloat16)

    # --- self attention for this query tile (single head, full attention) ---
    q = jnp.dot(xq_b, wqkv_ref[:, :D],
                preferred_element_type=jnp.float32) + bqkv_ref[:, :D]    # (TQ, D) f32
    # Contract the D axes directly (Q . K^T) -- no K transpose materialized.
    s = jax.lax.dot_general(q.astype(jnp.bfloat16), k_scr[...],
                            (((1,), (1,)), ((), ())),
                            preferred_element_type=jnp.float32) * scale  # (TQ, L)
    s = s - jnp.max(s, axis=-1, keepdims=True)
    e = jnp.exp(s)
    inv = pl.reciprocal(jnp.sum(e, axis=-1, keepdims=True))              # exact
    attn = e * inv

    # Write the attention map immediately (bf16) so the DMA overlaps the FFN below.
    if emit_attn:
        attn_ref[0] = attn.astype(attn_ref.dtype)

    ctx = jnp.dot(attn.astype(jnp.bfloat16), v_scr[...],
                  preferred_element_type=jnp.float32)                    # (TQ, D)
    new_x = jnp.dot(ctx.astype(jnp.bfloat16), wo_ref[...],
                    preferred_element_type=jnp.float32) + bo_ref[...]

    # residual + norm 1 (f32 elementwise path)
    h = _layernorm(x_q + new_x, g1_ref[...], be1_ref[...])

    # --- position-wise FFN (conv1d kernel_size=1 == linear) ---
    y = jnp.dot(h.astype(jnp.bfloat16), w1_ref[...],
                preferred_element_type=jnp.float32) + b1_ref[...]
    y = jnp.maximum(y, 0.0)
    y = jnp.dot(y.astype(jnp.bfloat16), w2_ref[...],
                preferred_element_type=jnp.float32) + b2_ref[...]

    # residual + norm 2
    z = _layernorm(h + y, g2_ref[...], be2_ref[...])

    # Encoder's final norm fused into the last layer (saves an HBM round trip).
    if apply_final_norm:
        z = _layernorm(z, gf_ref[...], bef_ref[...])

    xo_ref[0] = z


def layernorm_kernel(x_ref, g_ref, b_ref, o_ref):
    o_ref[0] = _layernorm(x_ref[0], g_ref[...], b_ref[...])


# --------------------------------------------------------------------------------------
# wrappers
# --------------------------------------------------------------------------------------

def encoder_layer_call(x, p, final_gamma, final_beta, *,
                       apply_final_norm, output_attention=True,
                       attn_dtype=jnp.bfloat16, q_tile=None):
    B, L, D = x.shape
    d_ff = p["w1"].shape[1]
    TQ = _pick_q_tile(L, q_tile, _default_max_q_tile())
    NQ = L // TQ

    in_specs = [
        pl.BlockSpec(memory_space=pl.ANY),              # x stays in HBM; manual DMA
        _weight_spec((D, 3 * D)), _weight_spec((1, 3 * D)),   # fused QKV weight + bias
        _weight_spec((D, D)), _weight_spec((1, D)),           # out proj
        _weight_spec((D, d_ff)), _weight_spec((1, d_ff)),     # FFN 1
        _weight_spec((d_ff, D)), _weight_spec((1, D)),        # FFN 2
        _weight_spec((1, D)), _weight_spec((1, D)),           # LN1
        _weight_spec((1, D)), _weight_spec((1, D)),           # LN2
        _weight_spec((1, D)), _weight_spec((1, D)),           # fused final LN
    ]
    x_out_spec = pl.BlockSpec((1, TQ, D), lambda b, qi: (b, qi, 0))
    if output_attention:
        out_specs = (x_out_spec,
                     pl.BlockSpec((1, TQ, L), lambda b, qi: (b, qi, 0)))
        out_shape = (jax.ShapeDtypeStruct((B, L, D), jnp.float32),
                     jax.ShapeDtypeStruct((B, L, L), attn_dtype))
    else:
        out_specs = x_out_spec
        out_shape = jax.ShapeDtypeStruct((B, L, D), jnp.float32)

    kernel = functools.partial(encoder_layer_kernel,
                               apply_final_norm=apply_final_norm,
                               emit_attn=output_attention)
    # NOTE: the batch axis is the megacore-parallel axis; on v7x (2 TCs/chip) B should
    # be >= 2 (and ideally even) to keep both TensorCores busy.
    call = pl.pallas_call(
        kernel,
        grid=(B, NQ),
        in_specs=in_specs,
        out_specs=out_specs,
        out_shape=out_shape,
        scratch_shapes=[pltpu.VMEM((L, D), jnp.float32),      # staged x[b] (single buf)
                        pltpu.VMEM((L, D), jnp.bfloat16),     # K scratch
                        pltpu.VMEM((L, D), jnp.bfloat16),     # V scratch
                        pltpu.SemaphoreType.DMA],             # staging-copy semaphore
        compiler_params=pltpu.CompilerParams(
            dimension_semantics=("parallel", "arbitrary"),
            vmem_limit_bytes=_default_vmem_limit_bytes()),
        cost_estimate=_cost_estimate(B, L, D, d_ff, output_attention),
    )
    res = call(x,
               p["wqkv"], p["bqkv"], p["wo"], p["bo"],
               p["w1"], p["b1"], p["w2"], p["b2"],
               p["g1"], p["be1"], p["g2"], p["be2"],
               final_gamma, final_beta)
    if output_attention:
        x_out, attn = res
        return x_out, attn
    return res, None


def final_norm_call(x, gamma, beta):
    # Only used in the degenerate "no attention layers" case; normally the final
    # LayerNorm is fused into the last encoder-layer kernel.
    B, L, D = x.shape
    return pl.pallas_call(
        layernorm_kernel,
        grid=(B,),
        in_specs=[pl.BlockSpec((1, L, D), lambda b: (b, 0, 0)),
                  pl.BlockSpec((1, D), lambda b: (0, 0)),
                  pl.BlockSpec((1, D), lambda b: (0, 0))],
        out_specs=pl.BlockSpec((1, L, D), lambda b: (b, 0, 0)),
        out_shape=jax.ShapeDtypeStruct((B, L, D), jnp.float32),
        compiler_params=pltpu.CompilerParams(dimension_semantics=("parallel",)),
    )(x, gamma, beta)


def encoder_forward(x, layer_params, norm_params, attn_mask=None, *,
                    output_attention=True, q_tile=None):
    """Mirrors Encoder.forward with conv_layers=None and norm_layer=LayerNorm."""
    # TODO(synk): attn_mask is not supported (None in this configuration).
    del attn_mask
    B, L, D = x.shape
    if norm_params is not None:
        gamma_f, beta_f = norm_params["gamma"], norm_params["beta"]
    else:
        gamma_f = jnp.ones((1, D), jnp.float32)
        beta_f = jnp.zeros((1, D), jnp.float32)

    attns = []
    n = len(layer_params)
    for i, p in enumerate(layer_params):
        fuse_norm = (norm_params is not None) and (i == n - 1)
        x, attn = encoder_layer_call(x, p, gamma_f, beta_f,
                                     apply_final_norm=fuse_norm,
                                     output_attention=output_attention,
                                     q_tile=q_tile)
        attns.append(attn)
    if norm_params is not None and n == 0:
        x = final_norm_call(x, gamma_f, beta_f)
    return x, attns


def init_params(key, num_layers, d_model, d_ff):
    layer_params = []
    for i in range(num_layers):
        keys = jax.random.split(jax.random.fold_in(key, i), 8)
        s_attn = 1.0 / float(d_model) ** 0.5
        s_ff = 1.0 / float(d_ff) ** 0.5
        p = {
            # MXU-native bf16 weights in HBM; accumulation stays f32 inside the kernel.
            "wqkv": (jax.random.normal(keys[0], (d_model, 3 * d_model), jnp.float32)
                     * s_attn).astype(jnp.bfloat16),
            "bqkv": jax.random.normal(keys[1], (1, 3 * d_model), jnp.float32) * 0.02,
            "wo": (jax.random.normal(keys[2], (d_model, d_model), jnp.float32)
                   * s_attn).astype(jnp.bfloat16),
            "bo": jax.random.normal(keys[3], (1, d_model), jnp.float32) * 0.02,
            "w1": (jax.random.normal(keys[4], (d_model, d_ff), jnp.float32)
                   * s_attn).astype(jnp.bfloat16),
            "b1": jax.random.normal(keys[5], (1, d_ff), jnp.float32) * 0.02,
            "w2": (jax.random.normal(keys[6], (d_ff, d_model), jnp.float32)
                   * s_ff).astype(jnp.bfloat16),
            "b2": jax.random.normal(keys[7], (1, d_model), jnp.float32) * 0.02,
            "g1": jnp.ones((1, d_model), jnp.float32),
            "be1": jnp.zeros((1, d_model), jnp.float32),
            "g2": jnp.ones((1, d_model), jnp.float32),
            "be2": jnp.zeros((1, d_model), jnp.float32),
        }
        layer_params.append(p)
    norm_params = {
        "gamma": jnp.ones((1, d_model), jnp.float32),
        "beta": jnp.zeros((1, d_model), jnp.float32),
    }
    return layer_params, norm_params


# ---------------- pure-JAX reference (mirrors the kernel's bf16 casts) ----------------

def _reference_layer(x, p):
    D = x.shape[-1]
    xb = x.astype(jnp.bfloat16)
    w, b = p["wqkv"], p["bqkv"]
    q = jnp.einsum("bld,de->ble", xb, w[:, :D],
                   preferred_element_type=jnp.float32) + b[:, :D]
    k = (jnp.einsum("bld,de->ble", xb, w[:, D:2 * D],
                    preferred_element_type=jnp.float32)
         + b[:, D:2 * D]).astype(jnp.bfloat16)
    v = (jnp.einsum("bld,de->ble", xb, w[:, 2 * D:],
                    preferred_element_type=jnp.float32)
         + b[:, 2 * D:]).astype(jnp.bfloat16)
    s = jnp.einsum("bld,bmd->blm", q.astype(jnp.bfloat16), k,
                   preferred_element_type=jnp.float32) * (1.0 / float(D) ** 0.5)
    s = s - jnp.max(s, axis=-1, keepdims=True)
    e = jnp.exp(s)
    attn = e / jnp.sum(e, axis=-1, keepdims=True)
    ctx = jnp.einsum("blm,bmd->bld", attn.astype(jnp.bfloat16), v,
                     preferred_element_type=jnp.float32)
    new_x = jnp.einsum("bld,de->ble", ctx.astype(jnp.bfloat16), p["wo"],
                       preferred_element_type=jnp.float32) + p["bo"]
    h = _layernorm(x + new_x, p["g1"], p["be1"])
    y = jnp.einsum("bld,df->blf", h.astype(jnp.bfloat16), p["w1"],
                   preferred_element_type=jnp.float32) + p["b1"]
    y = jnp.maximum(y, 0.0)
    y = jnp.einsum("blf,fd->bld", y.astype(jnp.bfloat16), p["w2"],
                   preferred_element_type=jnp.float32) + p["b2"]
    z = _layernorm(h + y, p["g2"], p["be2"])
    return z, attn


def _reference_forward(x, layer_params, norm_params):
    attns = []
    for p in layer_params:
        x, a = _reference_layer(x, p)
        attns.append(a)
    if norm_params is not None:
        x = _layernorm(x, norm_params["gamma"], norm_params["beta"])
    return x, attns


if __name__ == "__main__":
    B, L, D, D_FF, N_LAYERS = 2, 16, 128, 256, 2
    key = jax.random.PRNGKey(0)
    k_x, k_p = jax.random.split(key)
    x = jax.random.normal(k_x, (B, L, D), jnp.float32)
    layer_params, norm_params = init_params(k_p, N_LAYERS, D, D_FF)

    # q_tile=8 -> 2 query tiles per batch element (exercises the staged-x / K/V carry).
    out, attns = encoder_forward(x, layer_params, norm_params, attn_mask=None,
                                 output_attention=True, q_tile=8)
    out = jax.block_until_ready(out)
    attns = [jax.block_until_ready(a) for a in attns]

    assert out.shape == (B, L, D)
    assert len(attns) == N_LAYERS and all(a.shape == (B, L, L) for a in attns)
    assert all(a.dtype == jnp.bfloat16 for a in attns)
    assert bool(jnp.all(jnp.isfinite(out)))

    # Fast path: skip the (B, L, L) attention-map writeback entirely.
    out_na, attns_na = encoder_forward(x, layer_params, norm_params, attn_mask=None,
                                       output_attention=False, q_tile=8)
    out_na = jax.block_until_ready(out_na)
    assert all(a is None for a in attns_na)
    assert bool(jnp.allclose(out, out_na, atol=1e-5, rtol=1e-5))

    ref_out, ref_attns = _reference_forward(x, layer_params, norm_params)
    max_err = float(jnp.max(jnp.abs(out - ref_out)))
    assert bool(jnp.allclose(out, ref_out, atol=5e-2, rtol=5e-2)), max_err
    for a, ra in zip(attns, ref_attns):
        assert bool(jnp.allclose(a.astype(jnp.float32), ra, atol=5e-2, rtol=5e-2))

    print("KERNEL_OK")
</pallas_src>

<mosaic_0001>
module attributes {stable_mosaic.version = 11 : i64} {
  func.func @encoder_layer_kernel(%arg0: i32, %arg1: i32, %arg2: memref<2x16x128xf32, #tpu.memory_space<any>>, %arg3: memref<128x384xbf16, #tpu.memory_space<vmem>>, %arg4: memref<1x384xf32, #tpu.memory_space<vmem>>, %arg5: memref<128x128xbf16, #tpu.memory_space<vmem>>, %arg6: memref<1x128xf32, #tpu.memory_space<vmem>>, %arg7: memref<128x256xbf16, #tpu.memory_space<vmem>>, %arg8: memref<1x256xf32, #tpu.memory_space<vmem>>, %arg9: memref<256x128xbf16, #tpu.memory_space<vmem>>, %arg10: memref<1x128xf32, #tpu.memory_space<vmem>>, %arg11: memref<1x128xf32, #tpu.memory_space<vmem>>, %arg12: memref<1x128xf32, #tpu.memory_space<vmem>>, %arg13: memref<1x128xf32, #tpu.memory_space<vmem>>, %arg14: memref<1x128xf32, #tpu.memory_space<vmem>>, %arg15: memref<1x128xf32, #tpu.memory_space<vmem>>, %arg16: memref<1x128xf32, #tpu.memory_space<vmem>>, %arg17: memref<1x8x128xf32, #tpu.memory_space<vmem>>, %arg18: memref<1x8x16xbf16, #tpu.memory_space<vmem>>, %arg19: memref<16x128xf32, #tpu.memory_space<vmem>>, %arg20: memref<16x128xbf16, #tpu.memory_space<vmem>>, %arg21: memref<16x128xbf16, #tpu.memory_space<vmem>>, %arg22: memref<!tpu.dma_semaphore, #tpu.memory_space<semaphore_mem>>) attributes {dimension_semantics = [#tpu.dimension_semantics<parallel>, #tpu.dimension_semantics<arbitrary>], iteration_bounds = array<i64: 2, 2>, scalar_prefetch = 0 : i64, scratch_operands = 4 : i64, tpu.core_type = #tpu.core_type<tc>, window_params = [{}, {pipeline_mode = #tpu.pipeline_mode<synchronous>, transform_indices = @transform_1, window_bounds = array<i64: 128, 384>}, {pipeline_mode = #tpu.pipeline_mode<synchronous>, transform_indices = @transform_2, window_bounds = array<i64: 1, 384>}, {pipeline_mode = #tpu.pipeline_mode<synchronous>, transform_indices = @transform_3, window_bounds = array<i64: 128, 128>}, {pipeline_mode = #tpu.pipeline_mode<synchronous>, transform_indices = @transform_4, window_bounds = array<i64: 1, 128>}, {pipeline_mode = #tpu.pipeline_mode<synchronous>, transform_indices = @transform_5, window_bounds = array<i64: 128, 256>}, {pipeline_mode = #tpu.pipeline_mode<synchronous>, transform_indices = @transform_6, window_bounds = array<i64: 1, 256>}, {pipeline_mode = #tpu.pipeline_mode<synchronous>, transform_indices = @transform_7, window_bounds = array<i64: 256, 128>}, {pipeline_mode = #tpu.pipeline_mode<synchronous>, transform_indices = @transform_8, window_bounds = array<i64: 1, 128>}, {pipeline_mode = #tpu.pipeline_mode<synchronous>, transform_indices = @transform_9, window_bounds = array<i64: 1, 128>}, {pipeline_mode = #tpu.pipeline_mode<synchronous>, transform_indices = @transform_10, window_bounds = array<i64: 1, 128>}, {pipeline_mode = #tpu.pipeline_mode<synchronous>, transform_indices = @transform_11, window_bounds = array<i64: 1, 128>}, {pipeline_mode = #tpu.pipeline_mode<synchronous>, transform_indices = @transform_12, window_bounds = array<i64: 1, 128>}, {pipeline_mode = #tpu.pipeline_mode<synchronous>, transform_indices = @transform_13, window_bounds = array<i64: 1, 128>}, {pipeline_mode = #tpu.pipeline_mode<synchronous>, transform_indices = @transform_14, window_bounds = array<i64: 1, 128>}, {transform_indices = @transform_15, window_bounds = array<i64: 1, 8, 128>}, {transform_indices = @transform_16, window_bounds = array<i64: 1, 8, 16>}]} {
    %c0_i32 = arith.constant 0 : i32
    %0 = arith.cmpi eq, %arg1, %c0_i32 : i32
    %1 = arith.extui %0 : i1 to i32
    %c0_i32_0 = arith.constant 0 : i32
    %2 = arith.cmpi ne, %1, %c0_i32_0 : i32
    scf.if %2 {
      %c0_i32_54 = arith.constant 0 : i32
      %c0_i32_55 = arith.constant 0 : i32
      %108 = tpu.memref_slice %arg2[%arg0, %c0_i32_54, %c0_i32_55] : memref<2x16x128xf32, #tpu.memory_space<any>> -> memref<1x16x128xf32, #tpu.memory_space<any>>
      %109 = tpu.memref_squeeze %108 : memref<1x16x128xf32, #tpu.memory_space<any>> -> memref<16x128xf32, #tpu.memory_space<any>>
      tpu.enqueue_dma source(%109 : memref<16x128xf32, #tpu.memory_space<any>>) target(%arg19 : memref<16x128xf32, #tpu.memory_space<vmem>>) target_semaphore(%arg22 : memref<!tpu.dma_semaphore, #tpu.memory_space<semaphore_mem>>)
      %c0_i32_56 = arith.constant 0 : i32
      %c0_i32_57 = arith.constant 0 : i32
      %110 = tpu.memref_slice %arg2[%arg0, %c0_i32_56, %c0_i32_57] : memref<2x16x128xf32, #tpu.memory_space<any>> -> memref<1x16x128xf32, #tpu.memory_space<any>>
      %111 = tpu.memref_squeeze %110 : memref<1x16x128xf32, #tpu.memory_space<any>> -> memref<16x128xf32, #tpu.memory_space<any>>
      tpu.wait_dma2 semaphore(%arg22 : memref<!tpu.dma_semaphore, #tpu.memory_space<semaphore_mem>>) src(%111 : memref<16x128xf32, #tpu.memory_space<any>>) dst(%arg19 : memref<16x128xf32, #tpu.memory_space<vmem>>)
      %c0_58 = arith.constant 0 : index
      %c0_59 = arith.constant 0 : index
      %112 = vector.load %arg19[%c0_58, %c0_59] : memref<16x128xf32, #tpu.memory_space<vmem>>, vector<16x128xf32>
      %113 = arith.truncf %112 : vector<16x128xf32> to vector<16x128xbf16>
      %c0_60 = arith.constant 0 : index
      %c128 = arith.constant 128 : index
      %114 = vector.load %arg3[%c0_60, %c128] : memref<128x384xbf16, #tpu.memory_space<vmem>>, vector<128x128xbf16>
      %cst_61 = arith.constant dense<0.000000e+00> : vector<16x128xf32>
      %115 = tpu.matmul %113, %114, %cst_61 {dimension_numbers = #tpu.dot_dimension_numbers<[1], [0], [0], [1], [0, 0, 1, 1], [], []>} : vector<16x128xbf16>, vector<128x128xbf16>, vector<16x128xf32> -> vector<16x128xf32>
      %c0_62 = arith.constant 0 : index
      %c128_63 = arith.constant 128 : index
      %116 = vector.load %arg4[%c0_62, %c128_63] : memref<1x384xf32, #tpu.memory_space<vmem>>, vector<1x128xf32>
      %117 = vector.broadcast %116 : vector<1x128xf32> to vector<16x128xf32>
      %118 = arith.addf %115, %117 : vector<16x128xf32>
      %119 = arith.truncf %118 : vector<16x128xf32> to vector<16x128xbf16>
      %c0_64 = arith.constant 0 : index
      %c0_65 = arith.constant 0 : index
      %120 = vector.load %arg20[%c0_64, %c0_65] : memref<16x128xbf16, #tpu.memory_space<vmem>>, vector<16x128xbf16>
      tpu.vector_store %arg20[%c0_64, %c0_65], %119 {strides = array<i32>} : memref<16x128xbf16, #tpu.memory_space<vmem>>, vector<16x128xbf16>,
      %c0_66 = arith.constant 0 : index
      %c256 = arith.constant 256 : index
      %121 = vector.load %arg3[%c0_66, %c256] : memref<128x384xbf16, #tpu.memory_space<vmem>>, vector<128x128xbf16>
      %cst_67 = arith.constant dense<0.000000e+00> : vector<16x128xf32>
      %122 = tpu.matmul %113, %121, %cst_67 {dimension_numbers = #tpu.dot_dimension_numbers<[1], [0], [0], [1], [0, 0, 1, 1], [], []>} : vector<16x128xbf16>, vector<128x128xbf16>, vector<16x128xf32> -> vector<16x128xf32>
      %c0_68 = arith.constant 0 : index
      %c256_69 = arith.constant 256 : index
      %123 = vector.load %arg4[%c0_68, %c256_69] : memref<1x384xf32, #tpu.memory_space<vmem>>, vector<1x128xf32>
      %124 = vector.broadcast %123 : vector<1x128xf32> to vector<16x128xf32>
      %125 = arith.addf %122, %124 : vector<16x128xf32>
      %126 = arith.truncf %125 : vector<16x128xf32> to vector<16x128xbf16>
      %c0_70 = arith.constant 0 : index
      %c0_71 = arith.constant 0 : index
      %127 = vector.load %arg21[%c0_70, %c0_71] : memref<16x128xbf16, #tpu.memory_space<vmem>>, vector<16x128xbf16>
      tpu.vector_store %arg21[%c0_70, %c0_71], %126 {strides = array<i32>} : memref<16x128xbf16, #tpu.memory_space<vmem>>, vector<16x128xbf16>,
    } else {
    }
    %c8_i32 = arith.constant 8 : i32
    %3 = arith.muli %arg1, %c8_i32 : i32
    %4 = tpu.assume_multiple %3, 8 : i32
    %5 = arith.index_cast %4 : i32 to index
    %c0 = arith.constant 0 : index
    %6 = vector.load %arg19[%5, %c0] : memref<16x128xf32, #tpu.memory_space<vmem>>, vector<8x128xf32>
    %7 = arith.truncf %6 : vector<8x128xf32> to vector<8x128xbf16>
    %c0_1 = arith.constant 0 : index
    %c0_2 = arith.constant 0 : index
    %8 = vector.load %arg3[%c0_1, %c0_2] : memref<128x384xbf16, #tpu.memory_space<vmem>>, vector<128x128xbf16>
    %cst = arith.constant dense<0.000000e+00> : vector<8x128xf32>
    %9 = tpu.matmul %7, %8, %cst {dimension_numbers = #tpu.dot_dimension_numbers<[1], [0], [0], [1], [0, 0, 1, 1], [], []>} : vector<8x128xbf16>, vector<128x128xbf16>, vector<8x128xf32> -> vector<8x128xf32>
    %c0_3 = arith.constant 0 : index
    %c0_4 = arith.constant 0 : index
    %10 = vector.load %arg4[%c0_3, %c0_4] : memref<1x384xf32, #tpu.memory_space<vmem>>, vector<1x128xf32>
    %11 = vector.broadcast %10 : vector<1x128xf32> to vector<8x128xf32>
    %12 = arith.addf %9, %11 : vector<8x128xf32>
    %13 = arith.truncf %12 : vector<8x128xf32> to vector<8x128xbf16>
    %c0_5 = arith.constant 0 : index
    %c0_6 = arith.constant 0 : index
    %14 = vector.load %arg20[%c0_5, %c0_6] : memref<16x128xbf16, #tpu.memory_space<vmem>>, vector<16x128xbf16>
    %cst_7 = arith.constant dense<0.000000e+00> : vector<8x16xf32>
    %15 = tpu.matmul %13, %14, %cst_7 {dimension_numbers = #tpu.dot_dimension_numbers<[1], [1], [0], [0], [0, 0, 1, 0], [], []>} : vector<8x128xbf16>, vector<16x128xbf16>, vector<8x16xf32> -> vector<8x16xf32>
    %cst_8 = arith.constant 0.0883883461 : f32
    %16 = vector.broadcast %cst_8 : f32 to vector<8x16xf32>
    %17 = arith.mulf %15, %16 : vector<8x16xf32>
    %cst_9 = arith.constant dense<0xFF800000> : vector<8xf32>
    %18 = vector.multi_reduction <maximumf>, %17, %cst_9 [1] : vector<8x16xf32> to vector<8xf32>
    %19 = vector.shape_cast %18 : vector<8xf32> to vector<8x1xf32>
    %20 = vector.broadcast %19 : vector<8x1xf32> to vector<8x16xf32>
    %21 = arith.subf %17, %20 : vector<8x16xf32>
    %22 = math.exp %21 : vector<8x16xf32>
    %cst_10 = arith.constant dense<0.000000e+00> : vector<8xf32>
    %23 = vector.multi_reduction <add>, %22, %cst_10 [1] : vector<8x16xf32> to vector<8xf32>
    %24 = vector.shape_cast %23 : vector<8xf32> to vector<8x1xf32>
    %25 = tpu.reciprocal %24 : vector<8x1xf32> -> vector<8x1xf32>
    %26 = vector.broadcast %25 : vector<8x1xf32> to vector<8x16xf32>
    %27 = arith.mulf %22, %26 : vector<8x16xf32>
    %28 = arith.truncf %27 : vector<8x16xf32> to vector<8x16xbf16>
    %c0_11 = arith.constant 0 : index
    %c0_12 = arith.constant 0 : index
    %c0_13 = arith.constant 0 : index
    %29 = vector.load %arg18[%c0_11, %c0_12, %c0_13] : memref<1x8x16xbf16, #tpu.memory_space<vmem>>, vector<1x8x16xbf16>
    %30 = vector.shape_cast %29 : vector<1x8x16xbf16> to vector<8x16xbf16>
    %31 = vector.shape_cast %28 : vector<8x16xbf16> to vector<1x8x16xbf16>
    tpu.vector_store %arg18[%c0_11, %c0_12, %c0_13], %31 {strides = array<i32>} : memref<1x8x16xbf16, #tpu.memory_space<vmem>>, vector<1x8x16xbf16>,
    %32 = arith.truncf %27 : vector<8x16xf32> to vector<8x16xbf16>
    %c0_14 = arith.constant 0 : index
    %c0_15 = arith.constant 0 : index
    %33 = vector.load %arg21[%c0_14, %c0_15] : memref<16x128xbf16, #tpu.memory_space<vmem>>, vector<16x128xbf16>
    %cst_16 = arith.constant dense<0.000000e+00> : vector<8x128xf32>
    %34 = tpu.matmul %32, %33, %cst_16 {dimension_numbers = #tpu.dot_dimension_numbers<[1], [0], [0], [1], [0, 0, 1, 1], [], []>} : vector<8x16xbf16>, vector<16x128xbf16>, vector<8x128xf32> -> vector<8x128xf32>
    %35 = arith.truncf %34 : vector<8x128xf32> to vector<8x128xbf16>
    %c0_17 = arith.constant 0 : index
    %c0_18 = arith.constant 0 : index
    %36 = vector.load %arg5[%c0_17, %c0_18] : memref<128x128xbf16, #tpu.memory_space<vmem>>, vector<128x128xbf16>
    %cst_19 = arith.constant dense<0.000000e+00> : vector<8x128xf32>
    %37 = tpu.matmul %35, %36, %cst_19 {dimension_numbers = #tpu.dot_dimension_numbers<[1], [0], [0], [1], [0, 0, 1, 1], [], []>} : vector<8x128xbf16>, vector<128x128xbf16>, vector<8x128xf32> -> vector<8x128xf32>
    %c0_20 = arith.constant 0 : index
    %c0_21 = arith.constant 0 : index
    %38 = vector.load %arg6[%c0_20, %c0_21] : memref<1x128xf32, #tpu.memory_space<vmem>>, vector<1x128xf32>
    %39 = vector.broadcast %38 : vector<1x128xf32> to vector<8x128xf32>
    %40 = arith.addf %37, %39 : vector<8x128xf32>
    %41 = arith.addf %6, %40 : vector<8x128xf32>
    %c0_22 = arith.constant 0 : index
    %c0_23 = arith.constant 0 : index
    %42 = vector.load %arg11[%c0_22, %c0_23] : memref<1x128xf32, #tpu.memory_space<vmem>>, vector<1x128xf32>
    %c0_24 = arith.constant 0 : index
    %c0_25 = arith.constant 0 : index
    %43 = vector.load %arg12[%c0_24, %c0_25] : memref<1x128xf32, #tpu.memory_space<vmem>>, vector<1x128xf32>
    %cst_26 = arith.constant dense<0.000000e+00> : vector<8xf32>
    %44 = vector.multi_reduction <add>, %41, %cst_26 [1] : vector<8x128xf32> to vector<8xf32>
    %45 = vector.shape_cast %44 : vector<8xf32> to vector<8x1xf32>
    %cst_27 = arith.constant 1.280000e+02 : f32
    %46 = vector.broadcast %cst_27 : f32 to vector<8x1xf32>
    %47 = arith.divf %45, %46 : vector<8x1xf32>
    %48 = vector.broadcast %47 : vector<8x1xf32> to vector<8x128xf32>
    %49 = arith.subf %41, %48 : vector<8x128xf32>
    %50 = arith.mulf %49, %49 : vector<8x128xf32>
    %cst_28 = arith.constant dense<0.000000e+00> : vector<8xf32>
    %51 = vector.multi_reduction <add>, %50, %cst_28 [1] : vector<8x128xf32> to vector<8xf32>
    %52 = vector.shape_cast %51 : vector<8xf32> to vector<8x1xf32>
    %cst_29 = arith.constant 1.280000e+02 : f32
    %53 = vector.broadcast %cst_29 : f32 to vector<8x1xf32>
    %54 = arith.divf %52, %53 : vector<8x1xf32>
    %55 = vector.broadcast %47 : vector<8x1xf32> to vector<8x128xf32>
    %56 = arith.subf %41, %55 : vector<8x128xf32>
    %cst_30 = arith.constant 9.99999974E-6 : f32
    %57 = vector.broadcast %cst_30 : f32 to vector<8x1xf32>
    %58 = arith.addf %54, %57 : vector<8x1xf32>
    %59 = math.rsqrt %58 : vector<8x1xf32>
    %60 = vector.broadcast %59 : vector<8x1xf32> to vector<8x128xf32>
    %61 = arith.mulf %56, %60 : vector<8x128xf32>
    %62 = vector.broadcast %42 : vector<1x128xf32> to vector<8x128xf32>
    %63 = arith.mulf %61, %62 : vector<8x128xf32>
    %64 = vector.broadcast %43 : vector<1x128xf32> to vector<8x128xf32>
    %65 = arith.addf %63, %64 : vector<8x128xf32>
    %66 = arith.truncf %65 : vector<8x128xf32> to vector<8x128xbf16>
    %c0_31 = arith.constant 0 : index
    %c0_32 = arith.constant 0 : index
    %67 = vector.load %arg7[%c0_31, %c0_32] : memref<128x256xbf16, #tpu.memory_space<vmem>>, vector<128x256xbf16>
    %cst_33 = arith.constant dense<0.000000e+00> : vector<8x256xf32>
    %68 = tpu.matmul %66, %67, %cst_33 {dimension_numbers = #tpu.dot_dimension_numbers<[1], [0], [0], [1], [0, 0, 1, 1], [], []>} : vector<8x128xbf16>, vector<128x256xbf16>, vector<8x256xf32> -> vector<8x256xf32>
    %c0_34 = arith.constant 0 : index
    %c0_35 = arith.constant 0 : index
    %69 = vector.load %arg8[%c0_34, %c0_35] : memref<1x256xf32, #tpu.memory_space<vmem>>, vector<1x256xf32>
    %70 = vector.broadcast %69 : vector<1x256xf32> to vector<8x256xf32>
    %71 = arith.addf %68, %70 : vector<8x256xf32>
    %cst_36 = arith.constant 0.000000e+00 : f32
    %72 = vector.broadcast %cst_36 : f32 to vector<8x256xf32>
    %73 = arith.maximumf %71, %72 : vector<8x256xf32>
    %74 = arith.truncf %73 : vector<8x256xf32> to vector<8x256xbf16>
    %c0_37 = arith.constant 0 : index
    %c0_38 = arith.constant 0 : index
    %75 = vector.load %arg9[%c0_37, %c0_38] : memref<256x128xbf16, #tpu.memory_space<vmem>>, vector<256x128xbf16>
    %cst_39 = arith.constant dense<0.000000e+00> : vector<8x128xf32>
    %76 = tpu.matmul %74, %75, %cst_39 {dimension_numbers = #tpu.dot_dimension_numbers<[1], [0], [0], [1], [0, 0, 1, 1], [], []>} : vector<8x256xbf16>, vector<256x128xbf16>, vector<8x128xf32> -> vector<8x128xf32>
    %c0_40 = arith.constant 0 : index
    %c0_41 = arith.constant 0 : index
    %77 = vector.load %arg10[%c0_40, %c0_41] : memref<1x128xf32, #tpu.memory_space<vmem>>, vector<1x128xf32>
    %78 = vector.broadcast %77 : vector<1x128xf32> to vector<8x128xf32>
    %79 = arith.addf %76, %78 : vector<8x128xf32>
    %80 = arith.addf %65, %79 : vector<8x128xf32>
    %c0_42 = arith.constant 0 : index
    %c0_43 = arith.constant 0 : index
    %81 = vector.load %arg13[%c0_42, %c0_43] : memref<1x128xf32, #tpu.memory_space<vmem>>, vector<1x128xf32>
    %c0_44 = arith.constant 0 : index
    %c0_45 = arith.constant 0 : index
    %82 = vector.load %arg14[%c0_44, %c0_45] : memref<1x128xf32, #tpu.memory_space<vmem>>, vector<1x128xf32>
    %cst_46 = arith.constant dense<0.000000e+00> : vector<8xf32>
    %83 = vector.multi_reduction <add>, %80, %cst_46 [1] : vector<8x128xf32> to vector<8xf32>
    %84 = vector.shape_cast %83 : vector<8xf32> to vector<8x1xf32>
    %cst_47 = arith.constant 1.280000e+02 : f32
    %85 = vector.broadcast %cst_47 : f32 to vector<8x1xf32>
    %86 = arith.divf %84, %85 : vector<8x1xf32>
    %87 = vector.broadcast %86 : vector<8x1xf32> to vector<8x128xf32>
    %88 = arith.subf %80, %87 : vector<8x128xf32>
    %89 = arith.mulf %88, %88 : vector<8x128xf32>
    %cst_48 = arith.constant dense<0.000000e+00> : vector<8xf32>
    %90 = vector.multi_reduction <add>, %89, %cst_48 [1] : vector<8x128xf32> to vector<8xf32>
    %91 = vector.shape_cast %90 : vector<8xf32> to vector<8x1xf32>
    %cst_49 = arith.constant 1.280000e+02 : f32
    %92 = vector.broadcast %cst_49 : f32 to vector<8x1xf32>
    %93 = arith.divf %91, %92 : vector<8x1xf32>
    %94 = vector.broadcast %86 : vector<8x1xf32> to vector<8x128xf32>
    %95 = arith.subf %80, %94 : vector<8x128xf32>
    %cst_50 = arith.constant 9.99999974E-6 : f32
    %96 = vector.broadcast %cst_50 : f32 to vector<8x1xf32>
    %97 = arith.addf %93, %96 : vector<8x1xf32>
    %98 = math.rsqrt %97 : vector<8x1xf32>
    %99 = vector.broadcast %98 : vector<8x1xf32> to vector<8x128xf32>
    %100 = arith.mulf %95, %99 : vector<8x128xf32>
    %101 = vector.broadcast %81 : vector<1x128xf32> to vector<8x128xf32>
    %102 = arith.mulf %100, %101 : vector<8x128xf32>
    %103 = vector.broadcast %82 : vector<1x128xf32> to vector<8x128xf32>
    %104 = arith.addf %102, %103 : vector<8x128xf32>
    %c0_51 = arith.constant 0 : index
    %c0_52 = arith.constant 0 : index
    %c0_53 = arith.constant 0 : index
    %105 = vector.load %arg17[%c0_51, %c0_52, %c0_53] : memref<1x8x128xf32, #tpu.memory_space<vmem>>, vector<1x8x128xf32>
    %106 = vector.shape_cast %105 : vector<1x8x128xf32> to vector<8x128xf32>
    %107 = vector.shape_cast %104 : vector<8x128xf32> to vector<1x8x128xf32>
    tpu.vector_store %arg17[%c0_51, %c0_52, %c0_53], %107 {strides = array<i32>} : memref<1x8x128xf32, #tpu.memory_space<vmem>>, vector<1x8x128xf32>,
    return
  }
  func.func @transform_1(%arg0: i32, %arg1: i32) -> (i32, i32) {
    %c0_i32 = arith.constant 0 : i32
    %c0_i32_0 = arith.constant 0 : i32
    %c0_i32_1 = arith.constant 0 : i32
    return %c0_i32, %c0_i32_0 : i32, i32
  }
  func.func @transform_2(%arg0: i32, %arg1: i32) -> (i32, i32) {
    %c0_i32 = arith.constant 0 : i32
    %c0_i32_0 = arith.constant 0 : i32
    %c0_i32_1 = arith.constant 0 : i32
    return %c0_i32, %c0_i32_0 : i32, i32
  }
  func.func @transform_3(%arg0: i32, %arg1: i32) -> (i32, i32) {
    %c0_i32 = arith.constant 0 : i32
    %c0_i32_0 = arith.constant 0 : i32
    %c0_i32_1 = arith.constant 0 : i32
    return %c0_i32, %c0_i32_0 : i32, i32
  }
  func.func @transform_4(%arg0: i32, %arg1: i32) -> (i32, i32) {
    %c0_i32 = arith.constant 0 : i32
    %c0_i32_0 = arith.constant 0 : i32
    %c0_i32_1 = arith.constant 0 : i32
    return %c0_i32, %c0_i32_0 : i32, i32
  }
  func.func @transform_5(%arg0: i32, %arg1: i32) -> (i32, i32) {
    %c0_i32 = arith.constant 0 : i32
    %c0_i32_0 = arith.constant 0 : i32
    %c0_i32_1 = arith.constant 0 : i32
    return %c0_i32, %c0_i32_0 : i32, i32
  }
  func.func @transform_6(%arg0: i32, %arg1: i32) -> (i32, i32) {
    %c0_i32 = arith.constant 0 : i32
    %c0_i32_0 = arith.constant 0 : i32
    %c0_i32_1 = arith.constant 0 : i32
    return %c0_i32, %c0_i32_0 : i32, i32
  }
  func.func @transform_7(%arg0: i32, %arg1: i32) -> (i32, i32) {
    %c0_i32 = arith.constant 0 : i32
    %c0_i32_0 = arith.constant 0 : i32
    %c0_i32_1 = arith.constant 0 : i32
    return %c0_i32, %c0_i32_0 : i32, i32
  }
  func.func @transform_8(%arg0: i32, %arg1: i32) -> (i32, i32) {
    %c0_i32 = arith.constant 0 : i32
    %c0_i32_0 = arith.constant 0 : i32
    %c0_i32_1 = arith.constant 0 : i32
    return %c0_i32, %c0_i32_0 : i32, i32
  }
  func.func @transform_9(%arg0: i32, %arg1: i32) -> (i32, i32) {
    %c0_i32 = arith.constant 0 : i32
    %c0_i32_0 = arith.constant 0 : i32
    %c0_i32_1 = arith.constant 0 : i32
    return %c0_i32, %c0_i32_0 : i32, i32
  }
  func.func @transform_10(%arg0: i32, %arg1: i32) -> (i32, i32) {
    %c0_i32 = arith.constant 0 : i32
    %c0_i32_0 = arith.constant 0 : i32
    %c0_i32_1 = arith.constant 0 : i32
    return %c0_i32, %c0_i32_0 : i32, i32
  }
  func.func @transform_11(%arg0: i32, %arg1: i32) -> (i32, i32) {
    %c0_i32 = arith.constant 0 : i32
    %c0_i32_0 = arith.constant 0 : i32
    %c0_i32_1 = arith.constant 0 : i32
    return %c0_i32, %c0_i32_0 : i32, i32
  }
  func.func @transform_12(%arg0: i32, %arg1: i32) -> (i32, i32) {
    %c0_i32 = arith.constant 0 : i32
    %c0_i32_0 = arith.constant 0 : i32
    %c0_i32_1 = arith.constant 0 : i32
    return %c0_i32, %c0_i32_0 : i32, i32
  }
  func.func @transform_13(%arg0: i32, %arg1: i32) -> (i32, i32) {
    %c0_i32 = arith.constant 0 : i32
    %c0_i32_0 = arith.constant 0 : i32
    %c0_i32_1 = arith.constant 0 : i32
    return %c0_i32, %c0_i32_0 : i32, i32
  }
  func.func @transform_14(%arg0: i32, %arg1: i32) -> (i32, i32) {
    %c0_i32 = arith.constant 0 : i32
    %c0_i32_0 = arith.constant 0 : i32
    %c0_i32_1 = arith.constant 0 : i32
    return %c0_i32, %c0_i32_0 : i32, i32
  }
  func.func @transform_15(%arg0: i32, %arg1: i32) -> (i32, i32, i32) {
    %c0_i32 = arith.constant 0 : i32
    %c0_i32_0 = arith.constant 0 : i32
    return %arg0, %arg1, %c0_i32 : i32, i32, i32
  }
  func.func @transform_16(%arg0: i32, %arg1: i32) -> (i32, i32, i32) {
    %c0_i32 = arith.constant 0 : i32
    %c0_i32_0 = arith.constant 0 : i32
    return %arg0, %arg1, %c0_i32 : i32, i32, i32
  }
}

</mosaic_0001>

<llo_original>
// kernel: tpu_custom_call.1
$region0: #{tpu_custom_call.1}
  #allocation0 [shape = 'u32[]', space=smem, size = 0x4, offset = 0x4, fixed_abs, tag = 'smem constant byte address 0x4 - core index']
  #allocation1 [shape = 'u32[144,128]{1,0:T(1,128)}', space=vmem, size = 0x12000, scoped, tag = 'internal scratch']
  #allocation2 [shape = 'f32[16,128]{1,0:T(8,128)}', space=vmem, size = 0x2000, scoped, tag = 'scratch operand']
  #allocation3 [shape = 'bf16[16,128]{1,0:T(16,128)(2,1)}', space=vmem, size = 0x1000, scoped, tag = 'scratch operand']
  #allocation4 [shape = 'bf16[16,128]{1,0:T(16,128)(2,1)}', space=vmem, size = 0x1000, scoped, tag = 'scratch operand']
  #allocation5 [shape = 's32[1]{0}', space=sflag, size = 0x4, scoped, tag = 'scratch operand']
  #allocation32 [shape = 's32[]', space=sflag, size = 0x4, offset = 0, fixed_abs, tag = 'sflag constant byte address 0x0 - dummy sync flag']
  #allocation33 [shape = 's32[]', space=sflag, size = 0x4, offset = 0, fixed_abs, tag = 'sflag constant byte address 0x0 - dummy sync flag']
  #allocation34 [shape = 'u32[]', space=smem, size = 0x4, offset = 0x44, fixed_abs, tag = 'smem constant byte address 0x44 - assertion arg 0']
  #allocation35 [shape = 'u32[]', space=smem, size = 0x4, offset = 0x48, fixed_abs, tag = 'smem constant byte address 0x48 - assertion arg 1']
  %s0 = inlined_call_operand.hbm [shape: f32[2,16,128], index: 0, kind: input, shape index: {}]
  %s1 = inlined_call_operand.hbm [shape: bf16[128,384], index: 1, kind: input, shape index: {}]
  %s2 = inlined_call_operand.hbm [shape: f32[1,384], index: 2, kind: input, shape index: {}]
  %s3 = inlined_call_operand.hbm [shape: bf16[128,128], index: 3, kind: input, shape index: {}]
  %s4 = inlined_call_operand.hbm [shape: f32[1,128], index: 4, kind: input, shape index: {}]
  %s5 = inlined_call_operand.hbm [shape: bf16[128,256], index: 5, kind: input, shape index: {}]
  %s6 = inlined_call_operand.hbm [shape: f32[1,256], index: 6, kind: input, shape index: {}]
  %s7 = inlined_call_operand.hbm [shape: bf16[256,128], index: 7, kind: input, shape index: {}]
  %s8 = inlined_call_operand.hbm [shape: f32[1,128], index: 8, kind: input, shape index: {}]
  %s9 = inlined_call_operand.hbm [shape: f32[1,128], index: 9, kind: input, shape index: {}]
  %s10 = inlined_call_operand.hbm [shape: f32[1,128], index: 10, kind: input, shape index: {}]
  %s11 = inlined_call_operand.hbm [shape: f32[1,128], index: 11, kind: input, shape index: {}]
  %s12 = inlined_call_operand.hbm [shape: f32[1,128], index: 12, kind: input, shape index: {}]
  %s13 = inlined_call_operand.hbm [shape: f32[1,128], index: 13, kind: input, shape index: {}]
  %s14 = inlined_call_operand.hbm [shape: f32[1,128], index: 14, kind: input, shape index: {}]
  %s15 = inlined_call_operand.hbm [shape: f32[2,16,128], index: 15, kind: output, shape index: {0}]
  %s16 = inlined_call_operand.hbm [shape: bf16[2,16,16], index: 16, kind: output, shape index: {1}]
  %17 = xla_tuple %s15, %s16
  %s18 = sld [smem:[#allocation0]]
  $region161: #{tpu_custom_call.1} parent=0
    _
  %s20 = ssub.s32 1, %s18
  %s21 = scalar_select 0, %s20, %s18
  $region1: #{tpu_custom_call.1} parent=0
    #allocation6 [shape = 'u8[98304]{0}', space=vmem, size = 0x18000, scoped, tag = 'input window, operand 1, single buffered']
    #allocation7 [shape = 's32[2]{0}', space=sflag, size = 0x8, scoped, tag = 'scoped memory for tpu_custom_call.1']
    #allocation8 [shape = 's32[2]{0}', space=sflag, size = 0x8, scoped, tag = 'scoped memory for tpu_custom_call.1']
    #allocation9 [shape = 'u8[1536]{0}', space=vmem, size = 0x800, scoped, tag = 'input window, operand 2, single buffered']
    #allocation10 [shape = 's32[1]{0}', space=sflag, size = 0x4, scoped, tag = 'scoped memory for tpu_custom_call.1']
    #allocation11 [shape = 'u8[32768]{0}', space=vmem, size = 0x8000, scoped, tag = 'input window, operand 3, single buffered']
    #allocation12 [shape = 'u8[512]{0}', space=vmem, size = 0x400, scoped, tag = 'input window, operand 4, single buffered']
    #allocation13 [shape = 's32[1]{0}', space=sflag, size = 0x4, scoped, tag = 'scoped memory for tpu_custom_call.1']
    #allocation14 [shape = 'u8[65536]{0}', space=vmem, size = 0x10000, scoped, tag = 'input window, operand 5, single buffered']
    #allocation15 [shape = 'u8[1024]{0}', space=vmem, size = 0x400, scoped, tag = 'input window, operand 6, single buffered']
    #allocation16 [shape = 's32[1]{0}', space=sflag, size = 0x4, scoped, tag = 'scoped memory for tpu_custom_call.1']
    #allocation17 [shape = 'u8[65536]{0}', space=vmem, size = 0x10000, scoped, tag = 'input window, operand 7, single buffered']
    #allocation18 [shape = 'u8[512]{0}', space=vmem, size = 0x400, scoped, tag = 'input window, operand 8, single buffered']
    #allocation19 [shape = 's32[1]{0}', space=sflag, size = 0x4, scoped, tag = 'scoped memory for tpu_custom_call.1']
    #allocation20 [shape = 'u8[512]{0}', space=vmem, size = 0x400, scoped, tag = 'input window, operand 9, single buffered']
    #allocation21 [shape = 'u8[512]{0}', space=vmem, size = 0x400, scoped, tag = 'input window, operand 10, single buffered']
    #allocation22 [shape = 's32[1]{0}', space=sflag, size = 0x4, scoped, tag = 'scoped memory for tpu_custom_call.1']
    #allocation23 [shape = 'u8[512]{0}', space=vmem, size = 0x400, scoped, tag = 'input window, operand 11, single buffered']
    #allocation24 [shape = 'u8[512]{0}', space=vmem, size = 0x400, scoped, tag = 'input window, operand 12, single buffered']
    #allocation25 [shape = 's32[1]{0}', space=sflag, size = 0x4, scoped, tag = 'scoped memory for tpu_custom_call.1']
    #allocation26 [shape = 'u8[512]{0}', space=vmem, size = 0x400, scoped, tag = 'input window, operand 13, single buffered']
    #allocation27 [shape = 'u8[512]{0}', space=vmem, size = 0x400, scoped, tag = 'input window, operand 14, single buffered']
    #allocation28 [shape = 's32[1]{0}', space=sflag, size = 0x4, scoped, tag = 'scoped memory for tpu_custom_call.1']
    #allocation29 [shape = 'u8[8192]{0}', space=vmem, size = 0x2000, scoped, tag = 'output window, operand 0']
    #allocation30 [shape = 'u8[4096]{0}', space=vmem, size = 0x1000, scoped, tag = 'output window, operand 1']
    #allocation31 [shape = 's32[2]{0}', space=sflag, size = 0x8, scoped, tag = 'scoped memory for tpu_custom_call.1']
    %22 = vsyncpa [#allocation7], 0
    %23 = vsyncpa [#allocation10], 0
    %24 = vsyncpa [#allocation13], 0
    %25 = vsyncpa [#allocation16], 0
    %26 = vsyncpa [#allocation19], 0
    %27 = vsyncpa [#allocation22], 0
    %28 = vsyncpa [#allocation25], 0
    %29 = vsyncpa [#allocation28], 0
    %30 = vsyncpa [#allocation8], 0
    %s31 = scalar_lea.sflag [#allocation8], 1
    %32 = vsyncpa %s31, 0
    %33 = vsyncpa [#allocation31], 0
    %s34 = scalar_lea.sflag [#allocation31], 1
    %35 = vsyncpa %s34, 0
    loop: start=0, step=1, limit=6
    $region2: #{tpu_custom_call.1} parent=1 // loop_pre_header
      _
    $region3: #{tpu_custom_call.1} parent=1 // loop_header
      %s37 = sphi 0, %s41
      %p38 = scmp.ge.s32.totalorder %s37, 6
      %s44 = sphi 0, %s56
      %s45 = sphi 0, %s52
      %s46 = sphi 0, %s44
      %s47 = sphi 0, %s45
      %s48 = sphi 0, %s46
      %s49 = sphi 0, %s47
      %s57 = sphi 0, %s57
      %s59 = sphi 0, %s57
      %s60 = sphi 0, %s59
      %s74 = sphi 0, %s60
      %s78 = sphi 0, %s78
      %s80 = sphi 0, %s78
      %s81 = sphi 0, %s80
      %s95 = sphi 0, %s81
      %s99 = sphi 0, %s99
      %s101 = sphi 0, %s99
      %s102 = sphi 0, %s101
      %s116 = sphi 0, %s102
      %s120 = sphi 0, %s120
      %s122 = sphi 0, %s120
      %s123 = sphi 0, %s122
      %s137 = sphi 0, %s123
      %s141 = sphi 0, %s141
      %s143 = sphi 0, %s141
      %s144 = sphi 0, %s143
      %s158 = sphi 0, %s144
      %s162 = sphi 0, %s162
      %s164 = sphi 0, %s162
      %s165 = sphi 0, %s164
      %s179 = sphi 0, %s165
      %s183 = sphi 0, %s183
      %s185 = sphi 0, %s183
      %s186 = sphi 0, %s185
      %s200 = sphi 0, %s186
      %s204 = sphi 0, %s204
      %s206 = sphi 0, %s204
      %s207 = sphi 0, %s206
      %s221 = sphi 0, %s207
      %s225 = sphi 0, %s225
      %s227 = sphi 0, %s225
      %s228 = sphi 0, %s227
      %s242 = sphi 0, %s228
      %s246 = sphi 0, %s246
      %s248 = sphi 0, %s246
      %s249 = sphi 0, %s248
      %s263 = sphi 0, %s249
      %s267 = sphi 0, %s267
      %s269 = sphi 0, %s267
      %s270 = sphi 0, %s269
      %s284 = sphi 0, %s270
      %s288 = sphi 0, %s288
      %s290 = sphi 0, %s288
      %s291 = sphi 0, %s290
      %s305 = sphi 0, %s291
      %s309 = sphi 0, %s309
      %s311 = sphi 0, %s309
      %s312 = sphi 0, %s311
      %s326 = sphi 0, %s312
      %s330 = sphi 0, %s330
      %s332 = sphi 0, %s330
      %s333 = sphi 0, %s332
      %s347 = sphi 0, %s333
      %s355 = sphi 0, %s357
      %s358 = sphi 0, %s355
      %s359 = sphi 0, %s358
      %s375 = sphi 0, %s359
      %s383 = sphi 0, %s385
      %s386 = sphi 0, %s383
      %s387 = sphi 0, %s386
      %s403 = sphi 0, %s387
    $region4: #{tpu_custom_call.1} parent=1 // loop_header_branch
      %40 = sbr.rel (%p38) target = $region8
    $region5: #{tpu_custom_call.1} parent=1 // loop_body
      %s42 = ssub.s32 %s37, 1
      %s43 = ssub.s32 %s37, 2
      %s50 = sadd.s32 1, %s45
      %p51 = scmp.ge.s32.totalorder %s50, 2
      %s52 = scalar_select %p51, 0, %s50
      %s53 = sadd.s32 1, %s44
      %s54 = scalar_select %p51, %s53, %s44
      %p55 = scmp.ge.s32.totalorder %s54, 2
      %s56 = scalar_select %p55, 0, %s54
      %s58 = sadd.s32 %s57, 1
      %p61 = scmp.eq.s32.totalorder %s37, 3
      %p62 = scmp.ne.s32.totalorder %s57, %s59
      %p63 = scmp.eq.s32.totalorder %s37, 0
      %p64 = por %p62, %p63
      %p65 = scmp.ne.s32.totalorder %s57, %s59
      %p66 = scmp.eq.s32.totalorder %s42, 3
      %p67 = por %p65, %p66
      %p68 = scmp.ne.s32.totalorder %s59, %s60
      %p69 = scmp.eq.s32.totalorder %s42, 0
      %p70 = por %p68, %p69
      %p71 = scmp.ne.s32.totalorder %s59, %s60
      %p72 = scmp.eq.s32.totalorder %s43, 3
      %p73 = por %p71, %p72
      %p75 = scmp.ne.s32.totalorder %s60, %s74
      %p76 = scmp.eq.s32.totalorder %s43, 0
      %p77 = por %p75, %p76
      %s79 = sadd.s32 %s78, 1
      %p82 = scmp.eq.s32.totalorder %s37, 3
      %p83 = scmp.ne.s32.totalorder %s78, %s80
      %p84 = scmp.eq.s32.totalorder %s37, 0
      %p85 = por %p83, %p84
      %p86 = scmp.ne.s32.totalorder %s78, %s80
      %p87 = scmp.eq.s32.totalorder %s42, 3
      %p88 = por %p86, %p87
      %p89 = scmp.ne.s32.totalorder %s80, %s81
      %p90 = scmp.eq.s32.totalorder %s42, 0
      %p91 = por %p89, %p90
      %p92 = scmp.ne.s32.totalorder %s80, %s81
      %p93 = scmp.eq.s32.totalorder %s43, 3
      %p94 = por %p92, %p93
      %p96 = scmp.ne.s32.totalorder %s81, %s95
      %p97 = scmp.eq.s32.totalorder %s43, 0
      %p98 = por %p96, %p97
      %s100 = sadd.s32 %s99, 1
      %p103 = scmp.eq.s32.totalorder %s37, 3
      %p104 = scmp.ne.s32.totalorder %s99, %s101
      %p105 = scmp.eq.s32.totalorder %s37, 0
      %p106 = por %p104, %p105
      %p107 = scmp.ne.s32.totalorder %s99, %s101
      %p108 = scmp.eq.s32.totalorder %s42, 3
      %p109 = por %p107, %p108
      %p110 = scmp.ne.s32.totalorder %s101, %s102
      %p111 = scmp.eq.s32.totalorder %s42, 0
      %p112 = por %p110, %p111
      %p113 = scmp.ne.s32.totalorder %s101, %s102
      %p114 = scmp.eq.s32.totalorder %s43, 3
      %p115 = por %p113, %p114
      %p117 = scmp.ne.s32.totalorder %s102, %s116
      %p118 = scmp.eq.s32.totalorder %s43, 0
      %p119 = por %p117, %p118
      %s121 = sadd.s32 %s120, 1
      %p124 = scmp.eq.s32.totalorder %s37, 3
      %p125 = scmp.ne.s32.totalorder %s120, %s122
      %p126 = scmp.eq.s32.totalorder %s37, 0
      %p127 = por %p125, %p126
      %p128 = scmp.ne.s32.totalorder %s120, %s122
      %p129 = scmp.eq.s32.totalorder %s42, 3
      %p130 = por %p128, %p129
      %p131 = scmp.ne.s32.totalorder %s122, %s123
      %p132 = scmp.eq.s32.totalorder %s42, 0
      %p133 = por %p131, %p132
      %p134 = scmp.ne.s32.totalorder %s122, %s123
      %p135 = scmp.eq.s32.totalorder %s43, 3
      %p136 = por %p134, %p135
      %p138 = scmp.ne.s32.totalorder %s123, %s137
      %p139 = scmp.eq.s32.totalorder %s43, 0
      %p140 = por %p138, %p139
      %s142 = sadd.s32 %s141, 1
      %p145 = scmp.eq.s32.totalorder %s37, 3
      %p146 = scmp.ne.s32.totalorder %s141, %s143
      %p147 = scmp.eq.s32.totalorder %s37, 0
      %p148 = por %p146, %p147
      %p149 = scmp.ne.s32.totalorder %s141, %s143
      %p150 = scmp.eq.s32.totalorder %s42, 3
      %p151 = por %p149, %p150
      %p152 = scmp.ne.s32.totalorder %s143, %s144
      %p153 = scmp.eq.s32.totalorder %s42, 0
      %p154 = por %p152, %p153
      %p155 = scmp.ne.s32.totalorder %s143, %s144
      %p156 = scmp.eq.s32.totalorder %s43, 3
      %p157 = por %p155, %p156
      %p159 = scmp.ne.s32.totalorder %s144, %s158
      %p160 = scmp.eq.s32.totalorder %s43, 0
      %p161 = por %p159, %p160
      %s163 = sadd.s32 %s162, 1
      %p166 = scmp.eq.s32.totalorder %s37, 3
      %p167 = scmp.ne.s32.totalorder %s162, %s164
      %p168 = scmp.eq.s32.totalorder %s37, 0
      %p169 = por %p167, %p168
      %p170 = scmp.ne.s32.totalorder %s162, %s164
      %p171 = scmp.eq.s32.totalorder %s42, 3
      %p172 = por %p170, %p171
      %p173 = scmp.ne.s32.totalorder %s164, %s165
      %p174 = scmp.eq.s32.totalorder %s42, 0
      %p175 = por %p173, %p174
      %p176 = scmp.ne.s32.totalorder %s164, %s165
      %p177 = scmp.eq.s32.totalorder %s43, 3
      %p178 = por %p176, %p177
      %p180 = scmp.ne.s32.totalorder %s165, %s179
      %p181 = scmp.eq.s32.totalorder %s43, 0
      %p182 = por %p180, %p181
      %s184 = sadd.s32 %s183, 1
      %p187 = scmp.eq.s32.totalorder %s37, 3
      %p188 = scmp.ne.s32.totalorder %s183, %s185
      %p189 = scmp.eq.s32.totalorder %s37, 0
      %p190 = por %p188, %p189
      %p191 = scmp.ne.s32.totalorder %s183, %s185
      %p192 = scmp.eq.s32.totalorder %s42, 3
      %p193 = por %p191, %p192
      %p194 = scmp.ne.s32.totalorder %s185, %s186
      %p195 = scmp.eq.s32.totalorder %s42, 0
      %p196 = por %p194, %p195
      %p197 = scmp.ne.s32.totalorder %s185, %s186
      %p198 = scmp.eq.s32.totalorder %s43, 3
      %p199 = por %p197, %p198
      %p201 = scmp.ne.s32.totalorder %s186, %s200
      %p202 = scmp.eq.s32.totalorder %s43, 0
      %p203 = por %p201, %p202
      %s205 = sadd.s32 %s204, 1
      %p208 = scmp.eq.s32.totalorder %s37, 3
      %p209 = scmp.ne.s32.totalorder %s204, %s206
      %p210 = scmp.eq.s32.totalorder %s37, 0
      %p211 = por %p209, %p210
      %p212 = scmp.ne.s32.totalorder %s204, %s206
      %p213 = scmp.eq.s32.totalorder %s42, 3
      %p214 = por %p212, %p213
      %p215 = scmp.ne.s32.totalorder %s206, %s207
      %p216 = scmp.eq.s32.totalorder %s42, 0
      %p217 = por %p215, %p216
      %p218 = scmp.ne.s32.totalorder %s206, %s207
      %p219 = scmp.eq.s32.totalorder %s43, 3
      %p220 = por %p218, %p219
      %p222 = scmp.ne.s32.totalorder %s207, %s221
      %p223 = scmp.eq.s32.totalorder %s43, 0
      %p224 = por %p222, %p223
      %s226 = sadd.s32 %s225, 1
      %p229 = scmp.eq.s32.totalorder %s37, 3
      %p230 = scmp.ne.s32.totalorder %s225, %s227
      %p231 = scmp.eq.s32.totalorder %s37, 0
      %p232 = por %p230, %p231
      %p233 = scmp.ne.s32.totalorder %s225, %s227
      %p234 = scmp.eq.s32.totalorder %s42, 3
      %p235 = por %p233, %p234
      %p236 = scmp.ne.s32.totalorder %s227, %s228
      %p237 = scmp.eq.s32.totalorder %s42, 0
      %p238 = por %p236, %p237
      %p239 = scmp.ne.s32.totalorder %s227, %s228
      %p240 = scmp.eq.s32.totalorder %s43, 3
      %p241 = por %p239, %p240
      %p243 = scmp.ne.s32.totalorder %s228, %s242
      %p244 = scmp.eq.s32.totalorder %s43, 0
      %p245 = por %p243, %p244
      %s247 = sadd.s32 %s246, 1
      %p250 = scmp.eq.s32.totalorder %s37, 3
      %p251 = scmp.ne.s32.totalorder %s246, %s248
      %p252 = scmp.eq.s32.totalorder %s37, 0
      %p253 = por %p251, %p252
      %p254 = scmp.ne.s32.totalorder %s246, %s248
      %p255 = scmp.eq.s32.totalorder %s42, 3
      %p256 = por %p254, %p255
      %p257 = scmp.ne.s32.totalorder %s248, %s249
      %p258 = scmp.eq.s32.totalorder %s42, 0
      %p259 = por %p257, %p258
      %p260 = scmp.ne.s32.totalorder %s248, %s249
      %p261 = scmp.eq.s32.totalorder %s43, 3
      %p262 = por %p260, %p261
      %p264 = scmp.ne.s32.totalorder %s249, %s263
      %p265 = scmp.eq.s32.totalorder %s43, 0
      %p266 = por %p264, %p265
      %s268 = sadd.s32 %s267, 1
      %p271 = scmp.eq.s32.totalorder %s37, 3
      %p272 = scmp.ne.s32.totalorder %s267, %s269
      %p273 = scmp.eq.s32.totalorder %s37, 0
      %p274 = por %p272, %p273
      %p275 = scmp.ne.s32.totalorder %s267, %s269
      %p276 = scmp.eq.s32.totalorder %s42, 3
      %p277 = por %p275, %p276
      %p278 = scmp.ne.s32.totalorder %s269, %s270
      %p279 = scmp.eq.s32.totalorder %s42, 0
      %p280 = por %p278, %p279
      %p281 = scmp.ne.s32.totalorder %s269, %s270
      %p282 = scmp.eq.s32.totalorder %s43, 3
      %p283 = por %p281, %p282
      %p285 = scmp.ne.s32.totalorder %s270, %s284
      %p286 = scmp.eq.s32.totalorder %s43, 0
      %p287 = por %p285, %p286
      %s289 = sadd.s32 %s288, 1
      %p292 = scmp.eq.s32.totalorder %s37, 3
      %p293 = scmp.ne.s32.totalorder %s288, %s290
      %p294 = scmp.eq.s32.totalorder %s37, 0
      %p295 = por %p293, %p294
      %p296 = scmp.ne.s32.totalorder %s288, %s290
      %p297 = scmp.eq.s32.totalorder %s42, 3
      %p298 = por %p296, %p297
      %p299 = scmp.ne.s32.totalorder %s290, %s291
      %p300 = scmp.eq.s32.totalorder %s42, 0
      %p301 = por %p299, %p300
      %p302 = scmp.ne.s32.totalorder %s290, %s291
      %p303 = scmp.eq.s32.totalorder %s43, 3
      %p304 = por %p302, %p303
      %p306 = scmp.ne.s32.totalorder %s291, %s305
      %p307 = scmp.eq.s32.totalorder %s43, 0
      %p308 = por %p306, %p307
      %s310 = sadd.s32 %s309, 1
      %p313 = scmp.eq.s32.totalorder %s37, 3
      %p314 = scmp.ne.s32.totalorder %s309, %s311
      %p315 = scmp.eq.s32.totalorder %s37, 0
      %p316 = por %p314, %p315
      %p317 = scmp.ne.s32.totalorder %s309, %s311
      %p318 = scmp.eq.s32.totalorder %s42, 3
      %p319 = por %p317, %p318
      %p320 = scmp.ne.s32.totalorder %s311, %s312
      %p321 = scmp.eq.s32.totalorder %s42, 0
      %p322 = por %p320, %p321
      %p323 = scmp.ne.s32.totalorder %s311, %s312
      %p324 = scmp.eq.s32.totalorder %s43, 3
      %p325 = por %p323, %p324
      %p327 = scmp.ne.s32.totalorder %s312, %s326
      %p328 = scmp.eq.s32.totalorder %s43, 0
      %p329 = por %p327, %p328
      %s331 = sadd.s32 %s330, 1
      %p334 = scmp.eq.s32.totalorder %s37, 3
      %p335 = scmp.ne.s32.totalorder %s330, %s332
      %p336 = scmp.eq.s32.totalorder %s37, 0
      %p337 = por %p335, %p336
      %p338 = scmp.ne.s32.totalorder %s330, %s332
      %p339 = scmp.eq.s32.totalorder %s42, 3
      %p340 = por %p338, %p339
      %p341 = scmp.ne.s32.totalorder %s332, %s333
      %p342 = scmp.eq.s32.totalorder %s42, 0
      %p343 = por %p341, %p342
      %p344 = scmp.ne.s32.totalorder %s332, %s333
      %p345 = scmp.eq.s32.totalorder %s43, 3
      %p346 = por %p344, %p345
      %p348 = scmp.ne.s32.totalorder %s333, %s347
      %p349 = scmp.eq.s32.totalorder %s43, 0
      %p350 = por %p348, %p349
      %s351 = ssub.s32 %s44, %s56
      %s352 = ssub.s32 %s45, %s52
      %s353 = sor.u32 %s351, %s352
      %p354 = scmp.eq.s32.totalorder %s353, 0
      %s356 = sadd.s32 %s355, 1
      %s357 = scalar_select %p354, %s355, %s356
      %p360 = pneg %p354
      %p361 = scmp.eq.s32.totalorder %s37, 3
      %p362 = por %p360, %p361
      %p363 = scmp.ne.s32.totalorder %s355, %s358
      %p364 = scmp.eq.s32.totalorder %s37, 0
      %p365 = por %p363, %p364
      %p366 = scmp.ne.s32.totalorder %s355, %s358
      %p367 = scmp.eq.s32.totalorder %s42, 3
      %p368 = por %p366, %p367
      %p369 = scmp.ne.s32.totalorder %s358, %s359
      %p370 = scmp.eq.s32.totalorder %s42, 0
      %p371 = por %p369, %p370
      %p372 = scmp.ne.s32.totalorder %s358, %s359
      %p373 = scmp.eq.s32.totalorder %s43, 3
      %p374 = por %p372, %p373
      %p376 = scmp.ne.s32.totalorder %s359, %s375
      %p377 = scmp.eq.s32.totalorder %s43, 0
      %p378 = por %p376, %p377
      %s379 = ssub.s32 %s44, %s56
      %s380 = ssub.s32 %s45, %s52
      %s381 = sor.u32 %s379, %s380
      %p382 = scmp.eq.s32.totalorder %s381, 0
      %s384 = sadd.s32 %s383, 1
      %s385 = scalar_select %p382, %s383, %s384
      %p388 = pneg %p382
      %p389 = scmp.eq.s32.totalorder %s37, 3
      %p390 = por %p388, %p389
      %p391 = scmp.ne.s32.totalorder %s383, %s386
      %p392 = scmp.eq.s32.totalorder %s37, 0
      %p393 = por %p391, %p392
      %p394 = scmp.ne.s32.totalorder %s383, %s386
      %p395 = scmp.eq.s32.totalorder %s42, 3
      %p396 = por %p394, %p395
      %p397 = scmp.ne.s32.totalorder %s386, %s387
      %p398 = scmp.eq.s32.totalorder %s42, 0
      %p399 = por %p397, %p398
      %p400 = scmp.ne.s32.totalorder %s386, %s387
      %p401 = scmp.eq.s32.totalorder %s43, 3
      %p402 = por %p400, %p401
      %p404 = scmp.ne.s32.totalorder %s387, %s403
      %p405 = scmp.eq.s32.totalorder %s43, 0
      %p406 = por %p404, %p405
      %p407 = scmp.le.s32.totalorder 1, %s37
      %p408 = scmp.lt.s32.totalorder %s37, 5
      %p409 = pnand %p407, %p408
      %p410 = pneg %p409
      // Predicated region
      $region9: #{tpu_custom_call.1} parent=5 // pred_check
        _
      $region10: #{tpu_custom_call.1} parent=5 // pred_check_branch
        %412 = sbr.rel (%p409) target = $region12
      $region11: #{tpu_custom_call.1} parent=5 // pred_region
        %s413 = ssub.s32 %s37, 1
        // Predicated region
        $region13: #{tpu_custom_call.1} parent=11 // pred_check
          %p414 = pneg %p70
        $region14: #{tpu_custom_call.1} parent=11 // pred_check_branch
          %416 = sbr.rel (%p414) target = $region16
        $region15: #{tpu_custom_call.1} parent=11 // pred_region
          %s418 = ssub.s32 3072, 3072
          %419 = vsyncadd [#allocation7], %s418
          %s420 = sshll.u32 [#allocation6], 4
          %s421 = int_to_ptr.vmem [resolvable:$true] %s420
          %426 = dma.hbm_to_vmem [thread:$0]  %s1, 3072, %s421, [#allocation7], 192, 192, 12
        $region16: #{tpu_custom_call.1} parent=11 // pred_fallthru
          _
        // Predicated region
        $region17: #{tpu_custom_call.1} parent=11 // pred_check
          %p427 = pneg %p91
        $region18: #{tpu_custom_call.1} parent=11 // pred_check_branch
          %429 = sbr.rel (%p427) target = $region20
        $region19: #{tpu_custom_call.1} parent=11 // pred_region
          %s431 = ssub.s32 48, 48
          %432 = vsyncadd [#allocation10], %s431
          %s434 = sshll.u32 [#allocation9], 4
          %s435 = int_to_ptr.vmem [resolvable:$true] %s434
          %437 = dma.hbm_to_vmem [thread:$0]  %s2, 48, %s435, [#allocation10]
        $region20: #{tpu_custom_call.1} parent=11 // pred_fallthru
          _
        // Predicated region
        $region21: #{tpu_custom_call.1} parent=11 // pred_check
          %p438 = pneg %p112
        $region22: #{tpu_custom_call.1} parent=11 // pred_check_branch
          %440 = sbr.rel (%p438) target = $region24
        $region23: #{tpu_custom_call.1} parent=11 // pred_region
          %s442 = ssub.s32 1024, 1024
          %443 = vsyncadd [#allocation10], %s442
          %s444 = sshll.u32 [#allocation11], 4
          %s445 = int_to_ptr.vmem [resolvable:$true] %s444
          %450 = dma.hbm_to_vmem [thread:$0]  %s3, 1024, %s445, [#allocation10], 64, 64, 4
        $region24: #{tpu_custom_call.1} parent=11 // pred_fallthru
          _
        // Predicated region
        $region25: #{tpu_custom_call.1} parent=11 // pred_check
          %p451 = pneg %p133
        $region26: #{tpu_custom_call.1} parent=11 // pred_check_branch
          %453 = sbr.rel (%p451) target = $region28
        $region27: #{tpu_custom_call.1} parent=11 // pred_region
          %s455 = ssub.s32 16, 16
          %456 = vsyncadd [#allocation13], %s455
          %s458 = sshll.u32 [#allocation12], 4
          %s459 = int_to_ptr.vmem [resolvable:$true] %s458
          %461 = dma.hbm_to_vmem [thread:$0]  %s4, 16, %s459, [#allocation13]
        $region28: #{tpu_custom_call.1} parent=11 // pred_fallthru
          _
        // Predicated region
        $region29: #{tpu_custom_call.1} parent=11 // pred_check
          %p462 = pneg %p154
        $region30: #{tpu_custom_call.1} parent=11 // pred_check_branch
          %464 = sbr.rel (%p462) target = $region32
        $region31: #{tpu_custom_call.1} parent=11 // pred_region
          %s466 = ssub.s32 2048, 2048
          %467 = vsyncadd [#allocation13], %s466
          %s468 = sshll.u32 [#allocation14], 4
          %s469 = int_to_ptr.vmem [resolvable:$true] %s468
          %474 = dma.hbm_to_vmem [thread:$0]  %s5, 2048, %s469, [#allocation13], 128, 128, 8
        $region32: #{tpu_custom_call.1} parent=11 // pred_fallthru
          _
        // Predicated region
        $region33: #{tpu_custom_call.1} parent=11 // pred_check
          %p475 = pneg %p175
        $region34: #{tpu_custom_call.1} parent=11 // pred_check_branch
          %477 = sbr.rel (%p475) target = $region36
        $region35: #{tpu_custom_call.1} parent=11 // pred_region
          %s479 = ssub.s32 32, 32
          %480 = vsyncadd [#allocation16], %s479
          %s482 = sshll.u32 [#allocation15], 4
          %s483 = int_to_ptr.vmem [resolvable:$true] %s482
          %485 = dma.hbm_to_vmem [thread:$0]  %s6, 32, %s483, [#allocation16]
        $region36: #{tpu_custom_call.1} parent=11 // pred_fallthru
          _
        // Predicated region
        $region37: #{tpu_custom_call.1} parent=11 // pred_check
          %p486 = pneg %p196
        $region38: #{tpu_custom_call.1} parent=11 // pred_check_branch
          %488 = sbr.rel (%p486) target = $region40
        $region39: #{tpu_custom_call.1} parent=11 // pred_region
          %s490 = ssub.s32 2048, 2048
          %491 = vsyncadd [#allocation16], %s490
          %s492 = sshll.u32 [#allocation17], 4
          %s493 = int_to_ptr.vmem [resolvable:$true] %s492
          %498 = dma.hbm_to_vmem [thread:$0]  %s7, 2048, %s493, [#allocation16], 64, 64, 4
        $region40: #{tpu_custom_call.1} parent=11 // pred_fallthru
          _
        // Predicated region
        $region41: #{tpu_custom_call.1} parent=11 // pred_check
          %p499 = pneg %p217
        $region42: #{tpu_custom_call.1} parent=11 // pred_check_branch
          %501 = sbr.rel (%p499) target = $region44
        $region43: #{tpu_custom_call.1} parent=11 // pred_region
          %s503 = ssub.s32 16, 16
          %504 = vsyncadd [#allocation19], %s503
          %s506 = sshll.u32 [#allocation18], 4
          %s507 = int_to_ptr.vmem [resolvable:$true] %s506
          %509 = dma.hbm_to_vmem [thread:$0]  %s8, 16, %s507, [#allocation19]
        $region44: #{tpu_custom_call.1} parent=11 // pred_fallthru
          _
        // Predicated region
        $region45: #{tpu_custom_call.1} parent=11 // pred_check
          %p510 = pneg %p238
        $region46: #{tpu_custom_call.1} parent=11 // pred_check_branch
          %512 = sbr.rel (%p510) target = $region48
        $region47: #{tpu_custom_call.1} parent=11 // pred_region
          %s514 = ssub.s32 16, 16
          %515 = vsyncadd [#allocation19], %s514
          %s517 = sshll.u32 [#allocation20], 4
          %s518 = int_to_ptr.vmem [resolvable:$true] %s517
          %520 = dma.hbm_to_vmem [thread:$0]  %s9, 16, %s518, [#allocation19]
        $region48: #{tpu_custom_call.1} parent=11 // pred_fallthru
          _
        // Predicated region
        $region49: #{tpu_custom_call.1} parent=11 // pred_check
          %p521 = pneg %p259
        $region50: #{tpu_custom_call.1} parent=11 // pred_check_branch
          %523 = sbr.rel (%p521) target = $region52
        $region51: #{tpu_custom_call.1} parent=11 // pred_region
          %s525 = ssub.s32 16, 16
          %526 = vsyncadd [#allocation22], %s525
          %s528 = sshll.u32 [#allocation21], 4
          %s529 = int_to_ptr.vmem [resolvable:$true] %s528
          %531 = dma.hbm_to_vmem [thread:$0]  %s10, 16, %s529, [#allocation22]
        $region52: #{tpu_custom_call.1} parent=11 // pred_fallthru
          _
        // Predicated region
        $region53: #{tpu_custom_call.1} parent=11 // pred_check
          %p532 = pneg %p280
        $region54: #{tpu_custom_call.1} parent=11 // pred_check_branch
          %534 = sbr.rel (%p532) target = $region56
        $region55: #{tpu_custom_call.1} parent=11 // pred_region
          %s536 = ssub.s32 16, 16
          %537 = vsyncadd [#allocation22], %s536
          %s539 = sshll.u32 [#allocation23], 4
          %s540 = int_to_ptr.vmem [resolvable:$true] %s539
          %542 = dma.hbm_to_vmem [thread:$0]  %s11, 16, %s540, [#allocation22]
        $region56: #{tpu_custom_call.1} parent=11 // pred_fallthru
          _
        // Predicated region
        $region57: #{tpu_custom_call.1} parent=11 // pred_check
          %p543 = pneg %p301
        $region58: #{tpu_custom_call.1} parent=11 // pred_check_branch
          %545 = sbr.rel (%p543) target = $region60
        $region59: #{tpu_custom_call.1} parent=11 // pred_region
          %s547 = ssub.s32 16, 16
          %548 = vsyncadd [#allocation25], %s547
          %s550 = sshll.u32 [#allocation24], 4
          %s551 = int_to_ptr.vmem [resolvable:$true] %s550
          %553 = dma.hbm_to_vmem [thread:$0]  %s12, 16, %s551, [#allocation25]
        $region60: #{tpu_custom_call.1} parent=11 // pred_fallthru
          _
        // Predicated region
        $region61: #{tpu_custom_call.1} parent=11 // pred_check
          %p554 = pneg %p322
        $region62: #{tpu_custom_call.1} parent=11 // pred_check_branch
          %556 = sbr.rel (%p554) target = $region64
        $region63: #{tpu_custom_call.1} parent=11 // pred_region
          %s558 = ssub.s32 16, 16
          %559 = vsyncadd [#allocation25], %s558
          %s561 = sshll.u32 [#allocation26], 4
          %s562 = int_to_ptr.vmem [resolvable:$true] %s561
          %564 = dma.hbm_to_vmem [thread:$0]  %s13, 16, %s562, [#allocation25]
        $region64: #{tpu_custom_call.1} parent=11 // pred_fallthru
          _
        // Predicated region
        $region65: #{tpu_custom_call.1} parent=11 // pred_check
          %p565 = pneg %p343
        $region66: #{tpu_custom_call.1} parent=11 // pred_check_branch
          %567 = sbr.rel (%p565) target = $region68
        $region67: #{tpu_custom_call.1} parent=11 // pred_region
          %s569 = ssub.s32 16, 16
          %570 = vsyncadd [#allocation28], %s569
          %s572 = sshll.u32 [#allocation27], 4
          %s573 = int_to_ptr.vmem [resolvable:$true] %s572
          %575 = dma.hbm_to_vmem [thread:$0]  %s14, 16, %s573, [#allocation28]
        $region68: #{tpu_custom_call.1} parent=11 // pred_fallthru
          _
      $region12: #{tpu_custom_call.1} parent=5 // pred_fallthru
        _
      %p576 = scmp.lt.s32.totalorder %s37, 4
      // Predicated region
      $region69: #{tpu_custom_call.1} parent=5 // pred_check
        %p577 = pneg %p576
      $region70: #{tpu_custom_call.1} parent=5 // pred_check_branch
        %579 = sbr.rel (%p577) target = $region72
      $region71: #{tpu_custom_call.1} parent=5 // pred_region
        _
      $region72: #{tpu_custom_call.1} parent=5 // pred_fallthru
        _
      %p580 = scmp.le.s32.totalorder 1, %s37
      %p581 = scmp.lt.s32.totalorder %s37, 5
      %p582 = pnand %p580, %p581
      %p583 = pneg %p582
      // Predicated region
      $region73: #{tpu_custom_call.1} parent=5 // pred_check
        _
      $region74: #{tpu_custom_call.1} parent=5 // pred_check_branch
        %585 = sbr.rel (%p582) target = $region76
      $region75: #{tpu_custom_call.1} parent=5 // pred_region
        %s586 = ssub.s32 %s37, 1
        // Predicated region
        $region77: #{tpu_custom_call.1} parent=75 // pred_check
          %p587 = pneg %p70
        $region78: #{tpu_custom_call.1} parent=75 // pred_check_branch
          %589 = sbr.rel (%p587) target = $region80
        $region79: #{tpu_custom_call.1} parent=75 // pred_region
          %590 = dma.done [#allocation7], 3072
        $region80: #{tpu_custom_call.1} parent=75 // pred_fallthru
          _
        // Predicated region
        $region81: #{tpu_custom_call.1} parent=75 // pred_check
          %p591 = pneg %p91
        $region82: #{tpu_custom_call.1} parent=75 // pred_check_branch
          %593 = sbr.rel (%p591) target = $region84
        $region83: #{tpu_custom_call.1} parent=75 // pred_region
          %594 = dma.done [#allocation10], 48
        $region84: #{tpu_custom_call.1} parent=75 // pred_fallthru
          _
        // Predicated region
        $region85: #{tpu_custom_call.1} parent=75 // pred_check
          %p595 = pneg %p112
        $region86: #{tpu_custom_call.1} parent=75 // pred_check_branch
          %597 = sbr.rel (%p595) target = $region88
        $region87: #{tpu_custom_call.1} parent=75 // pred_region
          %598 = dma.done [#allocation10], 1024
        $region88: #{tpu_custom_call.1} parent=75 // pred_fallthru
          _
        // Predicated region
        $region89: #{tpu_custom_call.1} parent=75 // pred_check
          %p599 = pneg %p133
        $region90: #{tpu_custom_call.1} parent=75 // pred_check_branch
          %601 = sbr.rel (%p599) target = $region92
        $region91: #{tpu_custom_call.1} parent=75 // pred_region
          %602 = dma.done [#allocation13], 16
        $region92: #{tpu_custom_call.1} parent=75 // pred_fallthru
          _
        // Predicated region
        $region93: #{tpu_custom_call.1} parent=75 // pred_check
          %p603 = pneg %p154
        $region94: #{tpu_custom_call.1} parent=75 // pred_check_branch
          %605 = sbr.rel (%p603) target = $region96
        $region95: #{tpu_custom_call.1} parent=75 // pred_region
          %606 = dma.done [#allocation13], 2048
        $region96: #{tpu_custom_call.1} parent=75 // pred_fallthru
          _
        // Predicated region
        $region97: #{tpu_custom_call.1} parent=75 // pred_check
          %p607 = pneg %p175
        $region98: #{tpu_custom_call.1} parent=75 // pred_check_branch
          %609 = sbr.rel (%p607) target = $region100
        $region99: #{tpu_custom_call.1} parent=75 // pred_region
          %610 = dma.done [#allocation16], 32
        $region100: #{tpu_custom_call.1} parent=75 // pred_fallthru
          _
        // Predicated region
        $region101: #{tpu_custom_call.1} parent=75 // pred_check
          %p611 = pneg %p196
        $region102: #{tpu_custom_call.1} parent=75 // pred_check_branch
          %613 = sbr.rel (%p611) target = $region104
        $region103: #{tpu_custom_call.1} parent=75 // pred_region
          %614 = dma.done [#allocation16], 2048
        $region104: #{tpu_custom_call.1} parent=75 // pred_fallthru
          _
        // Predicated region
        $region105: #{tpu_custom_call.1} parent=75 // pred_check
          %p615 = pneg %p217
        $region106: #{tpu_custom_call.1} parent=75 // pred_check_branch
          %617 = sbr.rel (%p615) target = $region108
        $region107: #{tpu_custom_call.1} parent=75 // pred_region
          %618 = dma.done [#allocation19], 16
        $region108: #{tpu_custom_call.1} parent=75 // pred_fallthru
          _
        // Predicated region
        $region109: #{tpu_custom_call.1} parent=75 // pred_check
          %p619 = pneg %p238
        $region110: #{tpu_custom_call.1} parent=75 // pred_check_branch
          %621 = sbr.rel (%p619) target = $region112
        $region111: #{tpu_custom_call.1} parent=75 // pred_region
          %622 = dma.done [#allocation19], 16
        $region112: #{tpu_custom_call.1} parent=75 // pred_fallthru
          _
        // Predicated region
        $region113: #{tpu_custom_call.1} parent=75 // pred_check
          %p623 = pneg %p259
        $region114: #{tpu_custom_call.1} parent=75 // pred_check_branch
          %625 = sbr.rel (%p623) target = $region116
        $region115: #{tpu_custom_call.1} parent=75 // pred_region
          %626 = dma.done [#allocation22], 16
        $region116: #{tpu_custom_call.1} parent=75 // pred_fallthru
          _
        // Predicated region
        $region117: #{tpu_custom_call.1} parent=75 // pred_check
          %p627 = pneg %p280
        $region118: #{tpu_custom_call.1} parent=75 // pred_check_branch
          %629 = sbr.rel (%p627) target = $region120
        $region119: #{tpu_custom_call.1} parent=75 // pred_region
          %630 = dma.done [#allocation22], 16
        $region120: #{tpu_custom_call.1} parent=75 // pred_fallthru
          _
        // Predicated region
        $region121: #{tpu_custom_call.1} parent=75 // pred_check
          %p631 = pneg %p301
        $region122: #{tpu_custom_call.1} parent=75 // pred_check_branch
          %633 = sbr.rel (%p631) target = $region124
        $region123: #{tpu_custom_call.1} parent=75 // pred_region
          %634 = dma.done [#allocation25], 16
        $region124: #{tpu_custom_call.1} parent=75 // pred_fallthru
          _
        // Predicated region
        $region125: #{tpu_custom_call.1} parent=75 // pred_check
          %p635 = pneg %p322
        $region126: #{tpu_custom_call.1} parent=75 // pred_check_branch
          %637 = sbr.rel (%p635) target = $region128
        $region127: #{tpu_custom_call.1} parent=75 // pred_region
          %638 = dma.done [#allocation25], 16
        $region128: #{tpu_custom_call.1} parent=75 // pred_fallthru
          _
        // Predicated region
        $region129: #{tpu_custom_call.1} parent=75 // pred_check
          %p639 = pneg %p343
        $region130: #{tpu_custom_call.1} parent=75 // pred_check_branch
          %641 = sbr.rel (%p639) target = $region132
        $region131: #{tpu_custom_call.1} parent=75 // pred_region
          %642 = dma.done [#allocation28], 16
        $region132: #{tpu_custom_call.1} parent=75 // pred_fallthru
          _
        %p643 = pneg %p70
        %p644 = pneg %p67
        %p645 = pneg %p91
        %p646 = pneg %p88
        %p647 = pneg %p112
        %p648 = pneg %p109
        %p649 = pneg %p133
        %p650 = pneg %p130
        %p651 = pneg %p154
        %p652 = pneg %p151
        %p653 = pneg %p175
        %p654 = pneg %p172
        %p655 = pneg %p196
        %p656 = pneg %p193
        %p657 = pneg %p217
        %p658 = pneg %p214
        %p659 = pneg %p238
        %p660 = pneg %p235
        %p661 = pneg %p259
        %p662 = pneg %p256
        %p663 = pneg %p280
        %p664 = pneg %p277
        %p665 = pneg %p301
        %p666 = pneg %p298
        %p667 = pneg %p322
        %p668 = pneg %p319
        %p669 = pneg %p343
        %p670 = pneg %p340
        %p671 = pneg %p371
        %p672 = pneg %p368
        %s673 = sand.u32 %s358, 1
        %s674 = scalar_lea.sflag [#allocation8], %s673
        %s675 = sand.u32 %s358, 1
        %s676 = smul.addr %s675, 8
        %s677 = scalar_lea.vmem [#allocation29], %s676
        %p678 = pneg %p399
        %p679 = pneg %p396
        %s680 = sand.u32 %s386, 1
        %s681 = scalar_lea.sflag [#allocation31], %s680
        %s682 = sand.u32 %s386, 1
        %s683 = smul.addr %s682, 4
        %s684 = scalar_lea.vmem [#allocation30], %s683
        %p686 = scmp.eq.s32.totalorder %s47, 0
        // Predicated region
        $region133: #{tpu_custom_call.1} parent=75 // pred_check
          %p687 = pneg %p686
        $region134: #{tpu_custom_call.1} parent=75 // pred_check_branch
          %689 = sbr.rel (%p687) target = $region136
        $region135: #{tpu_custom_call.1} parent=75 // pred_region
          %s690 = smul.u32 %s46, 16
          %s691 = smul.addr %s690, 16
          %s692 = scalar_lea.hbm %s0, %s691
          // Predicated region
          $region137: #{tpu_custom_call.1} parent=135 // pred_check
            _
          $region138: #{tpu_custom_call.1} parent=135 // pred_check_branch
            %694 = sbr.rel target = $region140
          $region139: #{tpu_custom_call.1} parent=135 // pred_region
            %695 = sst [smem:[#allocation34]] [#allocation33]
            %696 = sst [smem:[#allocation35]] [#allocation32]
          $region140: #{tpu_custom_call.1} parent=135 // pred_fallthru
            _
          %698 = shalt.err (0)
          %s700 = sshll.u32 [#allocation2], 4
          %s701 = int_to_ptr.vmem [resolvable:$true] %s700
          %703 = dma.hbm_to_vmem [thread:$0]  %s692, 256, %s701, [#allocation5]
          %s704 = smul.u32 16, 1
          %s705 = sshll.u32 %s704, 4
          %706 = dma.done [#allocation5], %s705
          %v707 = vld [vmem:[#allocation2] sm:$0xff]
          %v708 = vld [vmem:[#allocation2 + $0x8] sm:$0xff]
          %v709 = vpack.c.bf16 %v708, %v707
          %v710 = vld [vmem:[#allocation6 + $0x4] sm:$0xf]
          %v711 = vld [vmem:[#allocation6 + $0x10] sm:$0xf]
          %v712 = vld [vmem:[#allocation6 + $0x1c] sm:$0xf]
          %v713 = vld [vmem:[#allocation6 + $0x28] sm:$0xf]
          %v714 = vld [vmem:[#allocation6 + $0x34] sm:$0xf]
          %v715 = vld [vmem:[#allocation6 + $0x40] sm:$0xf]
          %v716 = vld [vmem:[#allocation6 + $0x4c] sm:$0xf]
          %v717 = vld [vmem:[#allocation6 + $0x58] sm:$0xf]
          %v718 = vld [vmem:[#allocation6 + $0x64] sm:$0xf]
          %v719 = vld [vmem:[#allocation6 + $0x70] sm:$0xf]
          %v720 = vld [vmem:[#allocation6 + $0x7c] sm:$0xf]
          %v721 = vld [vmem:[#allocation6 + $0x88] sm:$0xf]
          %v722 = vld [vmem:[#allocation6 + $0x94] sm:$0xf]
          %v723 = vld [vmem:[#allocation6 + $0xa0] sm:$0xf]
          %v724 = vld [vmem:[#allocation6 + $0xac] sm:$0xf]
          %v725 = vld [vmem:[#allocation6 + $0xb8] sm:$0xf]
          %v726 = vld [vmem:[#allocation9 + $0x1] sm:$0x1]
          %v728 = vlaneseq
          %v729 = vshrl.u32 %v728, 7
          %v730 = vsub.s32 0, %v729
          %v731 = vrot.slane %v726, %v730
          %v749 = vunpack.c.l.b16 %v710
          %v750 = vunpack.c.l.b16 %v711
          %v751 = vunpack.c.l.b16 %v712
          %v752 = vunpack.c.l.b16 %v713
          %v753 = vunpack.c.l.b16 %v714
          %v754 = vunpack.c.l.b16 %v715
          %v755 = vunpack.c.l.b16 %v716
          %v756 = vunpack.c.l.b16 %v717
          %v757 = vunpack.c.l.b16 %v718
          %v758 = vunpack.c.l.b16 %v719
          %v759 = vunpack.c.l.b16 %v720
          %v760 = vunpack.c.l.b16 %v721
          %v761 = vunpack.c.l.b16 %v722
          %v762 = vunpack.c.l.b16 %v723
          %v763 = vunpack.c.l.b16 %v724
          %v764 = vunpack.c.l.b16 %v725
          %v765 = vpack.c.b16 %v750, %v749
          %v766 = vpack.c.b16 %v752, %v751
          %v767 = vpack.c.b16 %v754, %v753
          %v768 = vpack.c.b16 %v756, %v755
          %v769 = vpack.c.b16 %v758, %v757
          %v770 = vpack.c.b16 %v760, %v759
          %v771 = vpack.c.b16 %v762, %v761
          %v772 = vpack.c.b16 %v764, %v763
          %781 = vmatprep.subr.bf16.mxu0 0
          %782 = vmatpush1.bf16.msra.mxu0 %v765
          %783 = vmatprep.subr.bf16.mxu0 0
          %784 = vmatpush1.bf16.msra.mxu0 %v766
          %785 = vmatprep.subr.bf16.mxu0 0
          %786 = vmatpush1.bf16.msra.mxu0 %v767
          %787 = vmatprep.subr.bf16.mxu0 0
          %788 = vmatpush1.bf16.msra.mxu0 %v768
          %789 = vmatprep.subr.bf16.mxu0 0
          %790 = vmatpush1.bf16.msra.mxu0 %v769
          %791 = vmatprep.subr.bf16.mxu0 0
          %792 = vmatpush1.bf16.msra.mxu0 %v770
          %793 = vmatprep.subr.bf16.mxu0 0
          %794 = vmatpush1.bf16.msra.mxu0 %v771
          %795 = vmatprep.subr.bf16.mxu0 0
          %796 = vmatpush1.bf16.msra.mxu0 %v772
          %797 = vmatprep.subr.bf16.mxu0 0
          %798 = vmatpush1.bf16.msra.mxu0 0
          %799 = vmatprep.subr.bf16.mxu0 0
          %800 = vmatpush1.bf16.msra.mxu0 0
          %801 = vmatprep.subr.bf16.mxu0 0
          %802 = vmatpush1.bf16.msra.mxu0 0
          %803 = vmatprep.subr.bf16.mxu0 0
          %804 = vmatpush1.bf16.msra.mxu0 0
          %805 = vmatprep.subr.bf16.mxu0 0
          %806 = vmatpush1.bf16.msra.mxu0 0
          %807 = vmatprep.subr.bf16.mxu0 0
          %808 = vmatpush1.bf16.msra.mxu0 0
          %809 = vmatprep.subr.bf16.mxu0 0
          %810 = vmatpush1.bf16.msra.mxu0 0
          %811 = vmatprep.subr.bf16.mxu0 0
          %812 = vmatpush1.bf16.msra.mxu0 0
          %813 = vmatprep.mubr.bf16.mxu0 0
          %814 = vmatmul.mubr.bf16.gmra.mrb[0].mxu0 %v709
          %v815 = vpop.f32.mrb[0].mxu0
          %v816 = vadd.f32 %v731, %v815
          %v817 = vpop.f32.mrb[0].mxu0
          %v818 = vpop.f32.mrb[0].mxu0
          %v819 = vadd.f32 %v731, %v818
          %v820 = vpop.f32.mrb[0].mxu0
          %821 = vdwg.mxu0
          %v822 = vpack.c.bf16 %v819, %v816
          %823 = vst [vmem:[#allocation3] sm:$0xff] %v822
          %v824 = vld [vmem:[#allocation6 + $0x8] sm:$0xf]
          %v825 = vld [vmem:[#allocation6 + $0x14] sm:$0xf]
          %v826 = vld [vmem:[#allocation6 + $0x20] sm:$0xf]
          %v827 = vld [vmem:[#allocation6 + $0x2c] sm:$0xf]
          %v828 = vld [vmem:[#allocation6 + $0x38] sm:$0xf]
          %v829 = vld [vmem:[#allocation6 + $0x44] sm:$0xf]
          %v830 = vld [vmem:[#allocation6 + $0x50] sm:$0xf]
          %v831 = vld [vmem:[#allocation6 + $0x5c] sm:$0xf]
          %v832 = vld [vmem:[#allocation6 + $0x68] sm:$0xf]
          %v833 = vld [vmem:[#allocation6 + $0x74] sm:$0xf]
          %v834 = vld [vmem:[#allocation6 + $0x80] sm:$0xf]
          %v835 = vld [vmem:[#allocation6 + $0x8c] sm:$0xf]
          %v836 = vld [vmem:[#allocation6 + $0x98] sm:$0xf]
          %v837 = vld [vmem:[#allocation6 + $0xa4] sm:$0xf]
          %v838 = vld [vmem:[#allocation6 + $0xb0] sm:$0xf]
          %v839 = vld [vmem:[#allocation6 + $0xbc] sm:$0xf]
          %v840 = vld [vmem:[#allocation9 + $0x2] sm:$0x1]
          %v842 = vlaneseq
          %v843 = vshrl.u32 %v842, 7
          %v844 = vsub.s32 0, %v843
          %v845 = vrot.slane %v840, %v844
          %v863 = vunpack.c.l.b16 %v824
          %v864 = vunpack.c.l.b16 %v825
          %v865 = vunpack.c.l.b16 %v826
          %v866 = vunpack.c.l.b16 %v827
          %v867 = vunpack.c.l.b16 %v828
          %v868 = vunpack.c.l.b16 %v829
          %v869 = vunpack.c.l.b16 %v830
          %v870 = vunpack.c.l.b16 %v831
          %v871 = vunpack.c.l.b16 %v832
          %v872 = vunpack.c.l.b16 %v833
          %v873 = vunpack.c.l.b16 %v834
          %v874 = vunpack.c.l.b16 %v835
          %v875 = vunpack.c.l.b16 %v836
          %v876 = vunpack.c.l.b16 %v837
          %v877 = vunpack.c.l.b16 %v838
          %v878 = vunpack.c.l.b16 %v839
          %v879 = vpack.c.b16 %v864, %v863
          %v880 = vpack.c.b16 %v866, %v865
          %v881 = vpack.c.b16 %v868, %v867
          %v882 = vpack.c.b16 %v870, %v869
          %v883 = vpack.c.b16 %v872, %v871
          %v884 = vpack.c.b16 %v874, %v873
          %v885 = vpack.c.b16 %v876, %v875
          %v886 = vpack.c.b16 %v878, %v877
          %895 = vmatprep.subr.bf16.mxu0 0
          %896 = vmatpush1.bf16.msra.mxu0 %v879
          %897 = vmatprep.subr.bf16.mxu0 0
          %898 = vmatpush1.bf16.msra.mxu0 %v880
          %899 = vmatprep.subr.bf16.mxu0 0
          %900 = vmatpush1.bf16.msra.mxu0 %v881
          %901 = vmatprep.subr.bf16.mxu0 0
          %902 = vmatpush1.bf16.msra.mxu0 %v882
          %903 = vmatprep.subr.bf16.mxu0 0
          %904 = vmatpush1.bf16.msra.mxu0 %v883
          %905 = vmatprep.subr.bf16.mxu0 0
          %906 = vmatpush1.bf16.msra.mxu0 %v884
          %907 = vmatprep.subr.bf16.mxu0 0
          %908 = vmatpush1.bf16.msra.mxu0 %v885
          %909 = vmatprep.subr.bf16.mxu0 0
          %910 = vmatpush1.bf16.msra.mxu0 %v886
          %911 = vmatprep.subr.bf16.mxu0 0
          %912 = vmatpush1.bf16.msra.mxu0 0
          %913 = vmatprep.subr.bf16.mxu0 0
          %914 = vmatpush1.bf16.msra.mxu0 0
          %915 = vmatprep.subr.bf16.mxu0 0
          %916 = vmatpush1.bf16.msra.mxu0 0
          %917 = vmatprep.subr.bf16.mxu0 0
          %918 = vmatpush1.bf16.msra.mxu0 0
          %919 = vmatprep.subr.bf16.mxu0 0
          %920 = vmatpush1.bf16.msra.mxu0 0
          %921 = vmatprep.subr.bf16.mxu0 0
          %922 = vmatpush1.bf16.msra.mxu0 0
          %923 = vmatprep.subr.bf16.mxu0 0
          %924 = vmatpush1.bf16.msra.mxu0 0
          %925 = vmatprep.subr.bf16.mxu0 0
          %926 = vmatpush1.bf16.msra.mxu0 0
          %927 = vmatprep.mubr.bf16.mxu0 0
          %928 = vmatmul.mubr.bf16.gmra.mrb[0].mxu0 %v709
          %v929 = vpop.f32.mrb[0].mxu0
          %v930 = vadd.f32 %v845, %v929
          %v931 = vpop.f32.mrb[0].mxu0
          %v932 = vpop.f32.mrb[0].mxu0
          %v933 = vadd.f32 %v845, %v932
          %v934 = vpop.f32.mrb[0].mxu0
          %935 = vdwg.mxu0
          %v936 = vpack.c.bf16 %v933, %v930
          %937 = vst [vmem:[#allocation4] sm:$0xff] %v936
        $region136: #{tpu_custom_call.1} parent=75 // pred_fallthru
          _
        %s938 = smul.u32 %s47, 8
        %s939 = scalar_lea.vmem [#allocation2], %s938
        %v940 = vld [vmem:[%s939] sm:$0xff]
        %v941 = vpack.c.bf16 %v940, %v940
        %v942 = vld [vmem:[#allocation6] sm:$0xf]
        %v943 = vld [vmem:[#allocation6 + $0xc] sm:$0xf]
        %v944 = vld [vmem:[#allocation6 + $0x18] sm:$0xf]
        %v945 = vld [vmem:[#allocation6 + $0x24] sm:$0xf]
        %v946 = vld [vmem:[#allocation6 + $0x30] sm:$0xf]
        %v947 = vld [vmem:[#allocation6 + $0x3c] sm:$0xf]
        %v948 = vld [vmem:[#allocation6 + $0x48] sm:$0xf]
        %v949 = vld [vmem:[#allocation6 + $0x54] sm:$0xf]
        %v950 = vld [vmem:[#allocation6 + $0x60] sm:$0xf]
        %v951 = vld [vmem:[#allocation6 + $0x6c] sm:$0xf]
        %v952 = vld [vmem:[#allocation6 + $0x78] sm:$0xf]
        %v953 = vld [vmem:[#allocation6 + $0x84] sm:$0xf]
        %v954 = vld [vmem:[#allocation6 + $0x90] sm:$0xf]
        %v955 = vld [vmem:[#allocation6 + $0x9c] sm:$0xf]
        %v956 = vld [vmem:[#allocation6 + $0xa8] sm:$0xf]
        %v957 = vld [vmem:[#allocation6 + $0xb4] sm:$0xf]
        %v958 = vld [vmem:[#allocation9] sm:$0x1]
        %v960 = vlaneseq
        %v961 = vshrl.u32 %v960, 7
        %v962 = vsub.s32 0, %v961
        %v963 = vrot.slane %v958, %v962
        %v981 = vunpack.c.l.b16 %v942
        %v982 = vunpack.c.l.b16 %v943
        %v983 = vunpack.c.l.b16 %v944
        %v984 = vunpack.c.l.b16 %v945
        %v985 = vunpack.c.l.b16 %v946
        %v986 = vunpack.c.l.b16 %v947
        %v987 = vunpack.c.l.b16 %v948
        %v988 = vunpack.c.l.b16 %v949
        %v989 = vunpack.c.l.b16 %v950
        %v990 = vunpack.c.l.b16 %v951
        %v991 = vunpack.c.l.b16 %v952
        %v992 = vunpack.c.l.b16 %v953
        %v993 = vunpack.c.l.b16 %v954
        %v994 = vunpack.c.l.b16 %v955
        %v995 = vunpack.c.l.b16 %v956
        %v996 = vunpack.c.l.b16 %v957
        %v997 = vpack.c.b16 %v982, %v981
        %v998 = vpack.c.b16 %v984, %v983
        %v999 = vpack.c.b16 %v986, %v985
        %v1000 = vpack.c.b16 %v988, %v987
        %v1001 = vpack.c.b16 %v990, %v989
        %v1002 = vpack.c.b16 %v992, %v991
        %v1003 = vpack.c.b16 %v994, %v993
        %v1004 = vpack.c.b16 %v996, %v995
        %1013 = vmatprep.subr.bf16.mxu0 0
        %1014 = vmatpush1.bf16.msra.mxu0 %v997
        %1015 = vmatprep.subr.bf16.mxu0 0
        %1016 = vmatpush1.bf16.msra.mxu0 %v998
        %1017 = vmatprep.subr.bf16.mxu0 0
        %1018 = vmatpush1.bf16.msra.mxu0 %v999
        %1019 = vmatprep.subr.bf16.mxu0 0
        %1020 = vmatpush1.bf16.msra.mxu0 %v1000
        %1021 = vmatprep.subr.bf16.mxu0 0
        %1022 = vmatpush1.bf16.msra.mxu0 %v1001
        %1023 = vmatprep.subr.bf16.mxu0 0
        %1024 = vmatpush1.bf16.msra.mxu0 %v1002
        %1025 = vmatprep.subr.bf16.mxu0 0
        %1026 = vmatpush1.bf16.msra.mxu0 %v1003
        %1027 = vmatprep.subr.bf16.mxu0 0
        %1028 = vmatpush1.bf16.msra.mxu0 %v1004
        %1029 = vmatprep.subr.bf16.mxu0 0
        %1030 = vmatpush1.bf16.msra.mxu0 0
        %1031 = vmatprep.subr.bf16.mxu0 0
        %1032 = vmatpush1.bf16.msra.mxu0 0
        %1033 = vmatprep.subr.bf16.mxu0 0
        %1034 = vmatpush1.bf16.msra.mxu0 0
        %1035 = vmatprep.subr.bf16.mxu0 0
        %1036 = vmatpush1.bf16.msra.mxu0 0
        %1037 = vmatprep.subr.bf16.mxu0 0
        %1038 = vmatpush1.bf16.msra.mxu0 0
        %1039 = vmatprep.subr.bf16.mxu0 0
        %1040 = vmatpush1.bf16.msra.mxu0 0
        %1041 = vmatprep.subr.bf16.mxu0 0
        %1042 = vmatpush1.bf16.msra.mxu0 0
        %1043 = vmatprep.subr.bf16.mxu0 0
        %1044 = vmatpush1.bf16.msra.mxu0 0
        %1045 = vmatprep.mubr.bf16.mxu0 0
        %1046 = vmatmul.mubr.bf16.gmra.mrb[0].mxu0 %v941
        %v1047 = vpop.f32.mrb[0].mxu0
        %v1048 = vadd.f32 %v963, %v1047
        %v1049 = vpop.f32.mrb[0].mxu0
        %v1050 = vpop.f32.mrb[0].mxu0
        %v1051 = vpop.f32.mrb[0].mxu0
        %1052 = vdwg.mxu0
        %v1053 = vpack.c.bf16 %v1048, %v1048
        %v1054 = vld [vmem:[#allocation3] sm:$0xff]
        %1055 = vmatprep.subr.bf16.mxu0 0
        %1056 = vmatpush1.bf16.xpose.msra.mxu0 %v1054
        %1057 = vmatprep.subr.bf16.mxu0 0
        %1058 = vmatpush1.bf16.xpose.msra.mxu0 0
        %1059 = vmatprep.subr.bf16.mxu0 0
        %1060 = vmatpush1.bf16.xpose.msra.mxu0 0
        %1061 = vmatprep.subr.bf16.mxu0 0
        %1062 = vmatpush1.bf16.xpose.msra.mxu0 0
        %1063 = vmatprep.subr.bf16.mxu0 0
        %1064 = vmatpush1.bf16.xpose.msra.mxu0 0
        %1065 = vmatprep.subr.bf16.mxu0 0
        %1066 = vmatpush1.bf16.xpose.msra.mxu0 0
        %1067 = vmatprep.subr.bf16.mxu0 0
        %1068 = vmatpush1.bf16.xpose.msra.mxu0 0
        %1069 = vmatprep.subr.bf16.mxu0 0
        %1070 = vmatpush1.bf16.xpose.msra.mxu0 0
        %1071 = vmatprep.subr.bf16.mxu0 0
        %1072 = vmatpush1.bf16.xpose.msra.mxu0 0
        %1073 = vmatprep.subr.bf16.mxu0 0
        %1074 = vmatpush1.bf16.xpose.msra.mxu0 0
        %1075 = vmatprep.subr.bf16.mxu0 0
        %1076 = vmatpush1.bf16.xpose.msra.mxu0 0
        %1077 = vmatprep.subr.bf16.mxu0 0
        %1078 = vmatpush1.bf16.xpose.msra.mxu0 0
        %1079 = vmatprep.subr.bf16.mxu0 0
        %1080 = vmatpush1.bf16.xpose.msra.mxu0 0
        %1081 = vmatprep.subr.bf16.mxu0 0
        %1082 = vmatpush1.bf16.xpose.msra.mxu0 0
        %1083 = vmatprep.subr.bf16.mxu0 0
        %1084 = vmatpush1.bf16.xpose.msra.mxu0 0
        %1085 = vmatprep.subr.bf16.mxu0 0
        %1086 = vmatpush1.bf16.xpose.msra.mxu0 0
        %1087 = vmatprep.mubr.bf16.mxu0 0
        %1088 = vmatmul.mubr.bf16.gmra.mrb[0].mxu0 %v1053
        %v1089 = vpop.f32.mrb[0].mxu0
        %v1090 = vadd.f32 0.0, %v1089
        %v1091 = vpop.f32.mrb[0].mxu0
        %v1092 = vpop.f32.mrb[0].mxu0
        %v1093 = vpop.f32.mrb[0].mxu0
        %1094 = vdwg.mxu0
        %v1095 = vmul.f32 %v1090, 0.088388346
        %vm1096 = vcmask 130048
        %v1097 = vsel %vm1096, %v1095, -inf
        %1098 = vmax.xlane.f32.xlu0 %v1097
        %v1099 = vpop.xlane.xlu0 %1098
        %v1100 = vsub.f32 %v1095, %v1099
        %v1101 = vmul.f32 %v1100, 1.442695
        %v1102 = vpow.pop %v1101
        %v1103 = vsel %vm1096, %v1102, 0.0
        %1104 = vadd.xlane.f32.xlu0 %v1103
        %v1105 = vpop.xlane.xlu0 %1104
        %v1106 = vrcp.pop %v1105
        %v1107 = vmul.f32 %v1102, %v1106
        %v1108 = vpack.c.bf16 %v1107, %v1107
        %vm1109 = vcmask 125952
        %1110 = vst.msk [vmem:[%s684] sm:$0xf] %vm1109, %v1108
        %v1111 = vld [vmem:[#allocation4] sm:$0xff]
        %v1113 = vsel %vm1096, %v1108, 0
        %1115 = vmatprep.subr.bf16.mxu0 0
        %1116 = vmatpush1.bf16.msra.mxu0 %v1111
        %1117 = vmatprep.subr.bf16.mxu0 0
        %1118 = vmatpush1.bf16.msra.mxu0 0
        %1119 = vmatprep.subr.bf16.mxu0 0
        %1120 = vmatpush1.bf16.msra.mxu0 0
        %1121 = vmatprep.subr.bf16.mxu0 0
        %1122 = vmatpush1.bf16.msra.mxu0 0
        %1123 = vmatprep.subr.bf16.mxu0 0
        %1124 = vmatpush1.bf16.msra.mxu0 0
        %1125 = vmatprep.subr.bf16.mxu0 0
        %1126 = vmatpush1.bf16.msra.mxu0 0
        %1127 = vmatprep.subr.bf16.mxu0 0
        %1128 = vmatpush1.bf16.msra.mxu0 0
        %1129 = vmatprep.subr.bf16.mxu0 0
        %1130 = vmatpush1.bf16.msra.mxu0 0
        %1131 = vmatprep.subr.bf16.mxu0 0
        %1132 = vmatpush1.bf16.msra.mxu0 0
        %1133 = vmatprep.subr.bf16.mxu0 0
        %1134 = vmatpush1.bf16.msra.mxu0 0
        %1135 = vmatprep.subr.bf16.mxu0 0
        %1136 = vmatpush1.bf16.msra.mxu0 0
        %1137 = vmatprep.subr.bf16.mxu0 0
        %1138 = vmatpush1.bf16.msra.mxu0 0
        %1139 = vmatprep.subr.bf16.mxu0 0
        %1140 = vmatpush1.bf16.msra.mxu0 0
        %1141 = vmatprep.subr.bf16.mxu0 0
        %1142 = vmatpush1.bf16.msra.mxu0 0
        %1143 = vmatprep.subr.bf16.mxu0 0
        %1144 = vmatpush1.bf16.msra.mxu0 0
        %1145 = vmatprep.subr.bf16.mxu0 0
        %1146 = vmatpush1.bf16.msra.mxu0 0
        %1147 = vmatprep.mubr.bf16.mxu0 0
        %1148 = vmatmul.mubr.bf16.gmra.mrb[0].mxu0 %v1113
        %v1149 = vpop.f32.mrb[0].mxu0
        %v1150 = vadd.f32 0.0, %v1149
        %v1151 = vpop.f32.mrb[0].mxu0
        %v1152 = vpop.f32.mrb[0].mxu0
        %v1153 = vpop.f32.mrb[0].mxu0
        %1154 = vdwg.mxu0
        %v1155 = vpack.c.bf16 %v1150, %v1150
        %v1156 = vld [vmem:[#allocation11] sm:$0xf]
        %v1157 = vld [vmem:[#allocation11 + $0x4] sm:$0xf]
        %v1158 = vld [vmem:[#allocation11 + $0x8] sm:$0xf]
        %v1159 = vld [vmem:[#allocation11 + $0xc] sm:$0xf]
        %v1160 = vld [vmem:[#allocation11 + $0x10] sm:$0xf]
        %v1161 = vld [vmem:[#allocation11 + $0x14] sm:$0xf]
        %v1162 = vld [vmem:[#allocation11 + $0x18] sm:$0xf]
        %v1163 = vld [vmem:[#allocation11 + $0x1c] sm:$0xf]
        %v1164 = vld [vmem:[#allocation11 + $0x20] sm:$0xf]
        %v1165 = vld [vmem:[#allocation11 + $0x24] sm:$0xf]
        %v1166 = vld [vmem:[#allocation11 + $0x28] sm:$0xf]
        %v1167 = vld [vmem:[#allocation11 + $0x2c] sm:$0xf]
        %v1168 = vld [vmem:[#allocation11 + $0x30] sm:$0xf]
        %v1169 = vld [vmem:[#allocation11 + $0x34] sm:$0xf]
        %v1170 = vld [vmem:[#allocation11 + $0x38] sm:$0xf]
        %v1171 = vld [vmem:[#allocation11 + $0x3c] sm:$0xf]
        %v1172 = vld [vmem:[#allocation12] sm:$0x1]
        %v1174 = vlaneseq
        %v1175 = vshrl.u32 %v1174, 7
        %v1176 = vsub.s32 0, %v1175
        %v1177 = vrot.slane %v1172, %v1176
        %v1195 = vunpack.c.l.b16 %v1156
        %v1196 = vunpack.c.l.b16 %v1157
        %v1197 = vunpack.c.l.b16 %v1158
        %v1198 = vunpack.c.l.b16 %v1159
        %v1199 = vunpack.c.l.b16 %v1160
        %v1200 = vunpack.c.l.b16 %v1161
        %v1201 = vunpack.c.l.b16 %v1162
        %v1202 = vunpack.c.l.b16 %v1163
        %v1203 = vunpack.c.l.b16 %v1164
        %v1204 = vunpack.c.l.b16 %v1165
        %v1205 = vunpack.c.l.b16 %v1166
        %v1206 = vunpack.c.l.b16 %v1167
        %v1207 = vunpack.c.l.b16 %v1168
        %v1208 = vunpack.c.l.b16 %v1169
        %v1209 = vunpack.c.l.b16 %v1170
        %v1210 = vunpack.c.l.b16 %v1171
        %v1211 = vpack.c.b16 %v1196, %v1195
        %v1212 = vpack.c.b16 %v1198, %v1197
        %v1213 = vpack.c.b16 %v1200, %v1199
        %v1214 = vpack.c.b16 %v1202, %v1201
        %v1215 = vpack.c.b16 %v1204, %v1203
        %v1216 = vpack.c.b16 %v1206, %v1205
        %v1217 = vpack.c.b16 %v1208, %v1207
        %v1218 = vpack.c.b16 %v1210, %v1209
        %1227 = vmatprep.subr.bf16.mxu0 0
        %1228 = vmatpush1.bf16.msra.mxu0 %v1211
        %1229 = vmatprep.subr.bf16.mxu0 0
        %1230 = vmatpush1.bf16.msra.mxu0 %v1212
        %1231 = vmatprep.subr.bf16.mxu0 0
        %1232 = vmatpush1.bf16.msra.mxu0 %v1213
        %1233 = vmatprep.subr.bf16.mxu0 0
        %1234 = vmatpush1.bf16.msra.mxu0 %v1214
        %1235 = vmatprep.subr.bf16.mxu0 0
        %1236 = vmatpush1.bf16.msra.mxu0 %v1215
        %1237 = vmatprep.subr.bf16.mxu0 0
        %1238 = vmatpush1.bf16.msra.mxu0 %v1216
        %1239 = vmatprep.subr.bf16.mxu0 0
        %1240 = vmatpush1.bf16.msra.mxu0 %v1217
        %1241 = vmatprep.subr.bf16.mxu0 0
        %1242 = vmatpush1.bf16.msra.mxu0 %v1218
        %1243 = vmatprep.subr.bf16.mxu0 0
        %1244 = vmatpush1.bf16.msra.mxu0 0
        %1245 = vmatprep.subr.bf16.mxu0 0
        %1246 = vmatpush1.bf16.msra.mxu0 0
        %1247 = vmatprep.subr.bf16.mxu0 0
        %1248 = vmatpush1.bf16.msra.mxu0 0
        %1249 = vmatprep.subr.bf16.mxu0 0
        %1250 = vmatpush1.bf16.msra.mxu0 0
        %1251 = vmatprep.subr.bf16.mxu0 0
        %1252 = vmatpush1.bf16.msra.mxu0 0
        %1253 = vmatprep.subr.bf16.mxu0 0
        %1254 = vmatpush1.bf16.msra.mxu0 0
        %1255 = vmatprep.subr.bf16.mxu0 0
        %1256 = vmatpush1.bf16.msra.mxu0 0
        %1257 = vmatprep.subr.bf16.mxu0 0
        %1258 = vmatpush1.bf16.msra.mxu0 0
        %1259 = vmatprep.mubr.bf16.mxu0 0
        %1260 = vmatmul.mubr.bf16.gmra.mrb[0].mxu0 %v1155
        %v1261 = vpop.f32.mrb[0].mxu0
        %v1262 = vadd.f32 %v1177, %v1261
        %v1263 = vpop.f32.mrb[0].mxu0
        %v1264 = vpop.f32.mrb[0].mxu0
        %v1265 = vpop.f32.mrb[0].mxu0
        %1266 = vdwg.mxu0
        %v1267 = vadd.f32 %v940, %v1262
        %v1268 = vld [vmem:[#allocation20] sm:$0x1]
        %v1269 = vld [vmem:[#allocation21] sm:$0x1]
        %1270 = vadd.xlane.f32.xlu0 %v1267
        %v1271 = vpop.xlane.xlu0 %1270
        %v1272 = vrcp.pop 128.0
        %v1273 = vmul.f32 %v1271, %v1272
        %v1274 = vsub.f32 %v1267, %v1273
        %v1275 = vmul.f32 %v1274, %v1274
        %1276 = vadd.xlane.f32.xlu0 %v1275
        %v1277 = vpop.xlane.xlu0 %1276
        %v1278 = vmul.f32 %v1277, %v1272
        %v1279 = vadd.f32 %v1278, 1e-05
        %v1280 = vrsqrt.pop %v1279
        %v1281 = vmul.f32 %v1274, %v1280
        %v1283 = vlaneseq
        %v1284 = vshrl.u32 %v1283, 7
        %v1285 = vsub.s32 0, %v1284
        %v1286 = vrot.slane %v1268, %v1285
        %v1288 = vmul.f32 %v1281, %v1286
        %v1290 = vlaneseq
        %v1291 = vshrl.u32 %v1290, 7
        %v1292 = vsub.s32 0, %v1291
        %v1293 = vrot.slane %v1269, %v1292
        %v1295 = vadd.f32 %v1288, %v1293
        %v1296 = vpack.c.bf16 %v1295, %v1295
        %v1297 = vld [vmem:[#allocation14] sm:$0xff]
        %v1298 = vld [vmem:[#allocation14 + $0x8] sm:$0xff]
        %v1299 = vld [vmem:[#allocation14 + $0x10] sm:$0xff]
        %v1300 = vld [vmem:[#allocation14 + $0x18] sm:$0xff]
        %v1301 = vld [vmem:[#allocation14 + $0x20] sm:$0xff]
        %v1302 = vld [vmem:[#allocation14 + $0x28] sm:$0xff]
        %v1303 = vld [vmem:[#allocation14 + $0x30] sm:$0xff]
        %v1304 = vld [vmem:[#allocation14 + $0x38] sm:$0xff]
        %v1305 = vld [vmem:[#allocation14 + $0x40] sm:$0xff]
        %v1306 = vld [vmem:[#allocation14 + $0x48] sm:$0xff]
        %v1307 = vld [vmem:[#allocation14 + $0x50] sm:$0xff]
        %v1308 = vld [vmem:[#allocation14 + $0x58] sm:$0xff]
        %v1309 = vld [vmem:[#allocation14 + $0x60] sm:$0xff]
        %v1310 = vld [vmem:[#allocation14 + $0x68] sm:$0xff]
        %v1311 = vld [vmem:[#allocation14 + $0x70] sm:$0xff]
        %v1312 = vld [vmem:[#allocation14 + $0x78] sm:$0xff]
        %v1313 = vld [vmem:[#allocation15] sm:$0x3]
        %v1315 = vlaneseq
        %v1316 = vshrl.u32 %v1315, 7
        %v1317 = vsub.s32 0, %v1316
        %v1318 = vrot.slane %v1313, %v1317
        %v1319 = vlaneseq
        %v1320 = vshrl.u32 %v1319, 7
        %v1321 = vsub.s32 1, %v1320
        %v1322 = vrot.slane %v1313, %v1321
        %v1341 = vunpack.c.l.b16 %v1297
        %v1342 = vunpack.c.h.b16 %v1297
        %v1343 = vunpack.c.l.b16 %v1298
        %v1344 = vunpack.c.h.b16 %v1298
        %v1345 = vunpack.c.l.b16 %v1299
        %v1346 = vunpack.c.h.b16 %v1299
        %v1347 = vunpack.c.l.b16 %v1300
        %v1348 = vunpack.c.h.b16 %v1300
        %v1349 = vunpack.c.l.b16 %v1301
        %v1350 = vunpack.c.h.b16 %v1301
        %v1351 = vunpack.c.l.b16 %v1302
        %v1352 = vunpack.c.h.b16 %v1302
        %v1353 = vunpack.c.l.b16 %v1303
        %v1354 = vunpack.c.h.b16 %v1303
        %v1355 = vunpack.c.l.b16 %v1304
        %v1356 = vunpack.c.h.b16 %v1304
        %v1357 = vunpack.c.l.b16 %v1305
        %v1358 = vunpack.c.h.b16 %v1305
        %v1359 = vunpack.c.l.b16 %v1306
        %v1360 = vunpack.c.h.b16 %v1306
        %v1361 = vunpack.c.l.b16 %v1307
        %v1362 = vunpack.c.h.b16 %v1307
        %v1363 = vunpack.c.l.b16 %v1308
        %v1364 = vunpack.c.h.b16 %v1308
        %v1365 = vunpack.c.l.b16 %v1309
        %v1366 = vunpack.c.h.b16 %v1309
        %v1367 = vunpack.c.l.b16 %v1310
        %v1368 = vunpack.c.h.b16 %v1310
        %v1369 = vunpack.c.l.b16 %v1311
        %v1370 = vunpack.c.h.b16 %v1311
        %v1371 = vunpack.c.l.b16 %v1312
        %v1372 = vunpack.c.h.b16 %v1312
        %v1373 = vpack.c.b16 %v1343, %v1341
        %v1374 = vpack.c.b16 %v1344, %v1342
        %v1375 = vpack.c.b16 %v1347, %v1345
        %v1376 = vpack.c.b16 %v1348, %v1346
        %v1377 = vpack.c.b16 %v1351, %v1349
        %v1378 = vpack.c.b16 %v1352, %v1350
        %v1379 = vpack.c.b16 %v1355, %v1353
        %v1380 = vpack.c.b16 %v1356, %v1354
        %v1381 = vpack.c.b16 %v1359, %v1357
        %v1382 = vpack.c.b16 %v1360, %v1358
        %v1383 = vpack.c.b16 %v1363, %v1361
        %v1384 = vpack.c.b16 %v1364, %v1362
        %v1385 = vpack.c.b16 %v1367, %v1365
        %v1386 = vpack.c.b16 %v1368, %v1366
        %v1387 = vpack.c.b16 %v1371, %v1369
        %v1388 = vpack.c.b16 %v1372, %v1370
        %1405 = vmatprep.subr.bf16.mxu0 %v1374
        %1406 = vmatpush1.bf16.msra.mxu0 %v1373
        %1407 = vmatprep.subr.bf16.mxu0 %v1376
        %1408 = vmatpush1.bf16.msra.mxu0 %v1375
        %1409 = vmatprep.subr.bf16.mxu0 %v1378
        %1410 = vmatpush1.bf16.msra.mxu0 %v1377
        %1411 = vmatprep.subr.bf16.mxu0 %v1380
        %1412 = vmatpush1.bf16.msra.mxu0 %v1379
        %1413 = vmatprep.subr.bf16.mxu0 %v1382
        %1414 = vmatpush1.bf16.msra.mxu0 %v1381
        %1415 = vmatprep.subr.bf16.mxu0 %v1384
        %1416 = vmatpush1.bf16.msra.mxu0 %v1383
        %1417 = vmatprep.subr.bf16.mxu0 %v1386
        %1418 = vmatpush1.bf16.msra.mxu0 %v1385
        %1419 = vmatprep.subr.bf16.mxu0 %v1388
        %1420 = vmatpush1.bf16.msra.mxu0 %v1387
        %1421 = vmatprep.subr.bf16.mxu0 0
        %1422 = vmatpush1.bf16.msra.mxu0 0
        %1423 = vmatprep.subr.bf16.mxu0 0
        %1424 = vmatpush1.bf16.msra.mxu0 0
        %1425 = vmatprep.subr.bf16.mxu0 0
        %1426 = vmatpush1.bf16.msra.mxu0 0
        %1427 = vmatprep.subr.bf16.mxu0 0
        %1428 = vmatpush1.bf16.msra.mxu0 0
        %1429 = vmatprep.subr.bf16.mxu0 0
        %1430 = vmatpush1.bf16.msra.mxu0 0
        %1431 = vmatprep.subr.bf16.mxu0 0
        %1432 = vmatpush1.bf16.msra.mxu0 0
        %1433 = vmatprep.subr.bf16.mxu0 0
        %1434 = vmatpush1.bf16.msra.mxu0 0
        %1435 = vmatprep.subr.bf16.mxu0 0
        %1436 = vmatpush1.bf16.msra.mxu0 0
        %1437 = vmatprep.mubr.bf16.mxu0 0
        %1438 = vmatmul.mubr.bf16.gmra.mrb[0].mxu0 %v1296
        %v1439 = vpop.f32.mrb[0].mxu0
        %v1440 = vadd.f32 %v1318, %v1439
        %v1441 = vpop.f32.mrb[0].mxu0
        %v1442 = vadd.f32 %v1322, %v1441
        %v1443 = vpop.f32.mrb[0].mxu0
        %v1444 = vpop.f32.mrb[0].mxu0
        %1445 = vdwg.mxu0
        %v1446 = vmax.f32 %v1440, 0.0
        %v1447 = vmax.f32 %v1442, 0.0
        %v1448 = vpack.c.bf16 %v1446, %v1446
        %v1449 = vpack.c.bf16 %v1447, %v1447
        %v1450 = vld [vmem:[#allocation17] sm:$0xf]
        %v1451 = vld [vmem:[#allocation17 + $0x4] sm:$0xf]
        %v1452 = vld [vmem:[#allocation17 + $0x8] sm:$0xf]
        %v1453 = vld [vmem:[#allocation17 + $0xc] sm:$0xf]
        %v1454 = vld [vmem:[#allocation17 + $0x10] sm:$0xf]
        %v1455 = vld [vmem:[#allocation17 + $0x14] sm:$0xf]
        %v1456 = vld [vmem:[#allocation17 + $0x18] sm:$0xf]
        %v1457 = vld [vmem:[#allocation17 + $0x1c] sm:$0xf]
        %v1458 = vld [vmem:[#allocation17 + $0x20] sm:$0xf]
        %v1459 = vld [vmem:[#allocation17 + $0x24] sm:$0xf]
        %v1460 = vld [vmem:[#allocation17 + $0x28] sm:$0xf]
        %v1461 = vld [vmem:[#allocation17 + $0x2c] sm:$0xf]
        %v1462 = vld [vmem:[#allocation17 + $0x30] sm:$0xf]
        %v1463 = vld [vmem:[#allocation17 + $0x34] sm:$0xf]
        %v1464 = vld [vmem:[#allocation17 + $0x38] sm:$0xf]
        %v1465 = vld [vmem:[#allocation17 + $0x3c] sm:$0xf]
        %v1466 = vld [vmem:[#allocation17 + $0x40] sm:$0xf]
        %v1467 = vld [vmem:[#allocation17 + $0x44] sm:$0xf]
        %v1468 = vld [vmem:[#allocation17 + $0x48] sm:$0xf]
        %v1469 = vld [vmem:[#allocation17 + $0x4c] sm:$0xf]
        %v1470 = vld [vmem:[#allocation17 + $0x50] sm:$0xf]
        %v1471 = vld [vmem:[#allocation17 + $0x54] sm:$0xf]
        %v1472 = vld [vmem:[#allocation17 + $0x58] sm:$0xf]
        %v1473 = vld [vmem:[#allocation17 + $0x5c] sm:$0xf]
        %v1474 = vld [vmem:[#allocation17 + $0x60] sm:$0xf]
        %v1475 = vld [vmem:[#allocation17 + $0x64] sm:$0xf]
        %v1476 = vld [vmem:[#allocation17 + $0x68] sm:$0xf]
        %v1477 = vld [vmem:[#allocation17 + $0x6c] sm:$0xf]
        %v1478 = vld [vmem:[#allocation17 + $0x70] sm:$0xf]
        %v1479 = vld [vmem:[#allocation17 + $0x74] sm:$0xf]
        %v1480 = vld [vmem:[#allocation17 + $0x78] sm:$0xf]
        %v1481 = vld [vmem:[#allocation17 + $0x7c] sm:$0xf]
        %v1482 = vld [vmem:[#allocation18] sm:$0x1]
        %v1484 = vlaneseq
        %v1485 = vshrl.u32 %v1484, 7
        %v1486 = vsub.s32 0, %v1485
        %v1487 = vrot.slane %v1482, %v1486
        %v1521 = vunpack.c.l.b16 %v1450
        %v1522 = vunpack.c.l.b16 %v1451
        %v1523 = vunpack.c.l.b16 %v1452
        %v1524 = vunpack.c.l.b16 %v1453
        %v1525 = vunpack.c.l.b16 %v1454
        %v1526 = vunpack.c.l.b16 %v1455
        %v1527 = vunpack.c.l.b16 %v1456
        %v1528 = vunpack.c.l.b16 %v1457
        %v1529 = vunpack.c.l.b16 %v1458
        %v1530 = vunpack.c.l.b16 %v1459
        %v1531 = vunpack.c.l.b16 %v1460
        %v1532 = vunpack.c.l.b16 %v1461
        %v1533 = vunpack.c.l.b16 %v1462
        %v1534 = vunpack.c.l.b16 %v1463
        %v1535 = vunpack.c.l.b16 %v1464
        %v1536 = vunpack.c.l.b16 %v1465
        %v1537 = vunpack.c.l.b16 %v1466
        %v1538 = vunpack.c.l.b16 %v1467
        %v1539 = vunpack.c.l.b16 %v1468
        %v1540 = vunpack.c.l.b16 %v1469
        %v1541 = vunpack.c.l.b16 %v1470
        %v1542 = vunpack.c.l.b16 %v1471
        %v1543 = vunpack.c.l.b16 %v1472
        %v1544 = vunpack.c.l.b16 %v1473
        %v1545 = vunpack.c.l.b16 %v1474
        %v1546 = vunpack.c.l.b16 %v1475
        %v1547 = vunpack.c.l.b16 %v1476
        %v1548 = vunpack.c.l.b16 %v1477
        %v1549 = vunpack.c.l.b16 %v1478
        %v1550 = vunpack.c.l.b16 %v1479
        %v1551 = vunpack.c.l.b16 %v1480
        %v1552 = vunpack.c.l.b16 %v1481
        %v1553 = vpack.c.b16 %v1522, %v1521
        %v1554 = vpack.c.b16 %v1524, %v1523
        %v1555 = vpack.c.b16 %v1526, %v1525
        %v1556 = vpack.c.b16 %v1528, %v1527
        %v1557 = vpack.c.b16 %v1530, %v1529
        %v1558 = vpack.c.b16 %v1532, %v1531
        %v1559 = vpack.c.b16 %v1534, %v1533
        %v1560 = vpack.c.b16 %v1536, %v1535
        %v1561 = vpack.c.b16 %v1538, %v1537
        %v1562 = vpack.c.b16 %v1540, %v1539
        %v1563 = vpack.c.b16 %v1542, %v1541
        %v1564 = vpack.c.b16 %v1544, %v1543
        %v1565 = vpack.c.b16 %v1546, %v1545
        %v1566 = vpack.c.b16 %v1548, %v1547
        %v1567 = vpack.c.b16 %v1550, %v1549
        %v1568 = vpack.c.b16 %v1552, %v1551
        %1585 = vmatprep.subr.bf16.mxu0 0
        %1586 = vmatpush1.bf16.msra.mxu0 %v1553
        %1587 = vmatprep.subr.bf16.mxu0 0
        %1588 = vmatpush1.bf16.msra.mxu0 %v1554
        %1589 = vmatprep.subr.bf16.mxu0 0
        %1590 = vmatpush1.bf16.msra.mxu0 %v1555
        %1591 = vmatprep.subr.bf16.mxu0 0
        %1592 = vmatpush1.bf16.msra.mxu0 %v1556
        %1593 = vmatprep.subr.bf16.mxu0 0
        %1594 = vmatpush1.bf16.msra.mxu0 %v1557
        %1595 = vmatprep.subr.bf16.mxu0 0
        %1596 = vmatpush1.bf16.msra.mxu0 %v1558
        %1597 = vmatprep.subr.bf16.mxu0 0
        %1598 = vmatpush1.bf16.msra.mxu0 %v1559
        %1599 = vmatprep.subr.bf16.mxu0 0
        %1600 = vmatpush1.bf16.msra.mxu0 %v1560
        %1601 = vmatprep.subr.bf16.mxu0 0
        %1602 = vmatpush1.bf16.msra.mxu0 %v1561
        %1603 = vmatprep.subr.bf16.mxu0 0
        %1604 = vmatpush1.bf16.msra.mxu0 %v1562
        %1605 = vmatprep.subr.bf16.mxu0 0
        %1606 = vmatpush1.bf16.msra.mxu0 %v1563
        %1607 = vmatprep.subr.bf16.mxu0 0
        %1608 = vmatpush1.bf16.msra.mxu0 %v1564
        %1609 = vmatprep.subr.bf16.mxu0 0
        %1610 = vmatpush1.bf16.msra.mxu0 %v1565
        %1611 = vmatprep.subr.bf16.mxu0 0
        %1612 = vmatpush1.bf16.msra.mxu0 %v1566
        %1613 = vmatprep.subr.bf16.mxu0 0
        %1614 = vmatpush1.bf16.msra.mxu0 %v1567
        %1615 = vmatprep.subr.bf16.mxu0 0
        %1616 = vmatpush1.bf16.msra.mxu0 %v1568
        %1617 = vmatprep.mubr.bf16.mxu0 %v1449
        %1618 = vmatmul.mubr.bf16.gmra.mrb[0].mxu0 %v1448
        %v1619 = vpop.f32.mrb[0].mxu0
        %v1620 = vadd.f32 %v1487, %v1619
        %v1621 = vpop.f32.mrb[0].mxu0
        %v1622 = vpop.f32.mrb[0].mxu0
        %v1623 = vpop.f32.mrb[0].mxu0
        %1624 = vdwg.mxu0
        %v1625 = vadd.f32 %v1295, %v1620
        %v1626 = vld [vmem:[#allocation23] sm:$0x1]
        %v1627 = vld [vmem:[#allocation24] sm:$0x1]
        %1628 = vadd.xlane.f32.xlu0 %v1625
        %v1629 = vpop.xlane.xlu0 %1628
        %v1630 = vmul.f32 %v1629, %v1272
        %v1631 = vsub.f32 %v1625, %v1630
        %v1632 = vmul.f32 %v1631, %v1631
        %1633 = vadd.xlane.f32.xlu0 %v1632
        %v1634 = vpop.xlane.xlu0 %1633
        %v1635 = vmul.f32 %v1634, %v1272
        %v1636 = vadd.f32 %v1635, 1e-05
        %v1637 = vrsqrt.pop %v1636
        %v1638 = vmul.f32 %v1631, %v1637
        %v1640 = vlaneseq
        %v1641 = vshrl.u32 %v1640, 7
        %v1642 = vsub.s32 0, %v1641
        %v1643 = vrot.slane %v1626, %v1642
        %v1645 = vmul.f32 %v1638, %v1643
        %v1647 = vlaneseq
        %v1648 = vshrl.u32 %v1647, 7
        %v1649 = vsub.s32 0, %v1648
        %v1650 = vrot.slane %v1627, %v1649
        %v1652 = vadd.f32 %v1645, %v1650
        %1653 = vst [vmem:[%s677] sm:$0xff] %v1652
        %s1654 = sand.u32 %s358, 1
        %s1655 = scalar_lea.sflag [#allocation8], %s1654
        %s1656 = sand.u32 %s358, 1
        %s1657 = smul.addr %s1656, 8
        %s1658 = scalar_lea.vmem [#allocation29], %s1657
        %s1659 = sand.u32 %s386, 1
        %s1660 = scalar_lea.sflag [#allocation31], %s1659
        %s1661 = sand.u32 %s386, 1
        %s1662 = smul.addr %s1661, 4
        %s1663 = scalar_lea.vmem [#allocation30], %s1662
        // Predicated region
        $region141: #{tpu_custom_call.1} parent=75 // pred_check
          %p1664 = pneg %p368
        $region142: #{tpu_custom_call.1} parent=75 // pred_check_branch
          %1666 = sbr.rel (%p1664) target = $region144
        $region143: #{tpu_custom_call.1} parent=75 // pred_region
          %s1668 = ssub.s32 128, 128
          %1669 = vsyncadd %s1655, %s1668
          %s1670 = smul.addr %s46, 2
          %s1671 = sadd.s32 %s47, %s1670
          %s1672 = smul.addr %s1671, 128
          %s1673 = scalar_lea.hbm %s15, %s1672
          %s1675 = sshll.u32 %s1658, 4
          %s1676 = int_to_ptr.vmem [resolvable:$true] %s1675
          %1678 = dma.vmem_to_hbm [thread:$0]  %s1676, 128, %s1673, %s1655
        $region144: #{tpu_custom_call.1} parent=75 // pred_fallthru
          _
        // Predicated region
        $region145: #{tpu_custom_call.1} parent=75 // pred_check
          %p1679 = pneg %p396
        $region146: #{tpu_custom_call.1} parent=75 // pred_check_branch
          %1681 = sbr.rel (%p1679) target = $region148
        $region147: #{tpu_custom_call.1} parent=75 // pred_region
          %s1683 = ssub.s32 64, 64
          %1684 = vsyncadd %s1660, %s1683
          %s1685 = smul.addr %s46, 2
          %s1686 = sadd.s32 %s47, %s1685
          %s1687 = smul.addr %s1686, 64
          %s1688 = scalar_lea.hbm %s16, %s1687
          %s1690 = sshll.u32 %s1663, 4
          %s1691 = int_to_ptr.vmem [resolvable:$true] %s1690
          %1693 = dma.vmem_to_hbm [thread:$0]  %s1691, 64, %s1688, %s1660
        $region148: #{tpu_custom_call.1} parent=75 // pred_fallthru
          _
      $region76: #{tpu_custom_call.1} parent=5 // pred_fallthru
        _
      %p1694 = scmp.le.s32.totalorder 2, %s37
      // Predicated region
      $region149: #{tpu_custom_call.1} parent=5 // pred_check
        %p1695 = pneg %p1694
      $region150: #{tpu_custom_call.1} parent=5 // pred_check_branch
        %1697 = sbr.rel (%p1695) target = $region152
      $region151: #{tpu_custom_call.1} parent=5 // pred_region
        %s1698 = ssub.s32 %s37, 2
        // Predicated region
        $region153: #{tpu_custom_call.1} parent=151 // pred_check
          %p1699 = pneg %p374
        $region154: #{tpu_custom_call.1} parent=151 // pred_check_branch
          %1701 = sbr.rel (%p1699) target = $region156
        $region155: #{tpu_custom_call.1} parent=151 // pred_region
          %s1702 = sand.u32 %s359, 1
          %s1703 = scalar_lea.sflag [#allocation8], %s1702
          %s1704 = sand.u32 %s359, 1
          %s1705 = smul.addr %s1704, 8
          %s1706 = scalar_lea.vmem [#allocation29], %s1705
          %1707 = dma.done %s1703, 128
        $region156: #{tpu_custom_call.1} parent=151 // pred_fallthru
          _
        // Predicated region
        $region157: #{tpu_custom_call.1} parent=151 // pred_check
          %p1708 = pneg %p402
        $region158: #{tpu_custom_call.1} parent=151 // pred_check_branch
          %1710 = sbr.rel (%p1708) target = $region160
        $region159: #{tpu_custom_call.1} parent=151 // pred_region
          %s1711 = sand.u32 %s387, 1
          %s1712 = scalar_lea.sflag [#allocation31], %s1711
          %s1713 = sand.u32 %s387, 1
          %s1714 = smul.addr %s1713, 4
          %s1715 = scalar_lea.vmem [#allocation30], %s1714
          %1716 = dma.done %s1712, 64
        $region160: #{tpu_custom_call.1} parent=151 // pred_fallthru
          _
      $region152: #{tpu_custom_call.1} parent=5 // pred_fallthru
        _
    $region6: #{tpu_custom_call.1} parent=1 // loop_footer
      %s41 = sadd.s32 1, %s37
    $region7: #{tpu_custom_call.1} parent=1 // loop_footer_branch
      %36 = sbr.rel target = $region3
    $region8: #{tpu_custom_call.1} parent=1 // loop_exit
      _
    %1717 = vsyncpa [#allocation7], 1
    %s1718 = scalar_lea.sflag [#allocation7], 1
    %1719 = vsyncpa %s1718, 1
    %1720 = vsyncpa [#allocation10], 1
    %1721 = vsyncpa [#allocation13], 1
    %1722 = vsyncpa [#allocation16], 1
    %1723 = vsyncpa [#allocation19], 1
    %1724 = vsyncpa [#allocation22], 1
    %1725 = vsyncpa [#allocation25], 1
    %1726 = vsyncpa [#allocation28], 1
    %1727 = vsyncpa [#allocation8], 1
    %s1728 = scalar_lea.sflag [#allocation8], 1
    %1729 = vsyncpa %s1728, 1
    %1730 = vsyncpa [#allocation31], 1
    %s1731 = scalar_lea.sflag [#allocation31], 1
    %1732 = vsyncpa %s1731, 1
  %1733 = vsyncmov [#allocation5]
  %s1734 = vpop.sfrf %1733
  %p1735 = scmp.eq.s32.totalorder %s1734, 0
  %p1736 = pneg %p1735
  %1738 = shalt.err (%p1736)

</llo_original>
